<compile_context>
chip_gen: v7x
topology: tpu7x:2x2x1
jax: 0.10.0
libtpu: 0.0.40
codegen_flags: <defaults>
</compile_context>

<pallas_src>
import jax
import jax.numpy as jnp
from jax import lax
from jax.experimental import pallas as pl
from jax.experimental.pallas import tpu as pltpu

# -------- config (stands in for `args` / emb_weight shape) --------
VOCAB = 50
EMB_DIM = 16          # emb_weight.shape[1]
CONV_SIZE = 32        # args.conv_size
KERNEL_SIZE = 3       # args.kernel_size (odd)
SENT_LEN = 16         # args.sent_length
NUM_LAYERS = 4        # first_conv + 3 more
PAD = KERNEL_SIZE // 2
OUT_DIM = NUM_LAYERS * CONV_SIZE   # 128 -> lane-dense output block
BATCH = 16
MAX_BB = 256          # cap on sentences per grid step


def _choose_bb(batch):
    """Sentences per grid step.

    Fat blocks amortize the ~0.35us fixed per-grid-step cost; keep >=2 grid
    steps when the batch allows so dimension_semantics=("parallel",) can shard
    the batch axis across both TensorCores on v7x (single-TC v5e/v6e just get
    fewer, fatter serial steps).  BB is a multiple of 8 (or the whole batch)
    so the (BB, 128) output block satisfies the (8, 128) block constraint.
    """
    if batch < 16:
        return batch                          # one full-array block
    bb = min(MAX_BB, (batch // 2) // 8 * 8)   # >=2 steps, multiple of 8
    return max(bb, 8)


def _shift_rows(x, s):
    """result[m, :] = x[m - s, :]; rows shifted in from past the block edge are zero."""
    m, w = x.shape
    zeros = jnp.zeros((abs(s), w), dtype=x.dtype)
    if s > 0:
        return jnp.concatenate([zeros, x[: m - s, :]], axis=0)
    return jnp.concatenate([x[-s:, :], zeros], axis=0)


# -------- kernel --------
def _make_kernel(bb):
    m = bb * SENT_LEN

    def kernel(x_ref, w1_ref, wr_ref, b_ref, o_ref):
        # x_ref : (M, E)  f32      embedded tokens, bb sentences packed row-major
        # w1_ref: (K*E, C) f32     im2col-flattened first-conv weight
        # wr_ref: (3, K*C, C) f32  im2col-flattened remaining conv weights
        # b_ref : (4, C) f32       per-layer biases
        # o_ref : (bb, 4*C) f32    pooled features (one lane-dense 128-wide store)

        # Sentence-boundary masks, hoisted out of the layer/tap loops: one f32
        # (M, 1) mask per non-zero tap shift, reused by all 4 layers.  They
        # zero the rows where a shifted tap would leak across the boundary
        # between the bb sentences packed into the M dimension (matching the
        # zero padding of Conv1d(padding=K//2)).
        pos = lax.broadcasted_iota(jnp.int32, (m, 1), 0) % SENT_LEN
        masks = {}
        for k in range(KERNEL_SIZE):
            s = PAD - k
            if s > 0:
                masks[s] = (pos >= s).astype(jnp.float32)
            elif s < 0:
                masks[s] = (pos < SENT_LEN + s).astype(jnp.float32)

        biases = b_ref[...]                                        # (4, C)
        h = x_ref[...]                                             # (M, E)
        pooled = []
        for layer in range(NUM_LAYERS):
            w = w1_ref[...] if layer == 0 else wr_ref[layer - 1]   # (K*Cin, C)
            taps = []
            for k in range(KERNEL_SIZE):
                s = PAD - k                    # tap k reads row (m - s)
                if s == 0:
                    taps.append(h)
                else:
                    taps.append(_shift_rows(h, s) * masks[s])
            cols = jnp.concatenate(taps, axis=-1)                  # (M, K*Cin)
            h = jnp.maximum(
                jnp.dot(cols, w, preferred_element_type=jnp.float32)
                + biases[layer][None, :], 0.0)                     # (M, C)
            # MaxPool1d(L, stride=1).squeeze(-1): max over each sentence's L rows.
            pooled.append(jnp.max(h.reshape(bb, SENT_LEN, CONV_SIZE), axis=1))
        # Single unmasked 128-lane store (lane-dense output).
        o_ref[...] = jnp.concatenate(pooled, axis=-1)              # (bb, 4*C)

    return kernel


# -------- wrapper (jit-compatible, no host syncs) --------
def hiconvnet_encoder(sent, emb_weight, w1, wr, biases):
    """sent: (B, L) int token ids -> (B, NUM_LAYERS*CONV_SIZE) f32."""
    B, L = sent.shape
    assert L == SENT_LEN and KERNEL_SIZE % 2 == 1
    assert w1.shape == (KERNEL_SIZE, EMB_DIM, CONV_SIZE)
    C = CONV_SIZE

    bb = _choose_bb(B)
    b_pad = pl.cdiv(B, bb) * bb

    # Embedding lookup in the wrapper (exact f32 gather); the activations are
    # streamed into the kernel as a pipelined BlockSpec input.
    x = jnp.take(emb_weight.astype(jnp.float32), sent.astype(jnp.int32), axis=0)
    if b_pad != B:
        x = jnp.pad(x, ((0, b_pad - B), (0, 0), (0, 0)))
    x = x.reshape(b_pad * L, EMB_DIM)

    # im2col-flattened conv weights (built once per call, outside the kernel).
    w1_flat = w1.astype(jnp.float32).reshape(KERNEL_SIZE * EMB_DIM, C)
    wr_flat = wr.astype(jnp.float32).reshape(NUM_LAYERS - 1, KERNEL_SIZE * C, C)
    b = biases.astype(jnp.float32)

    m = bb * L
    n_blocks = b_pad // bb
    flops = 2 * b_pad * L * (KERNEL_SIZE * EMB_DIM * C
                             + (NUM_LAYERS - 1) * KERNEL_SIZE * C * C)
    bytes_accessed = 4 * (x.size + w1_flat.size + wr_flat.size + b.size
                          + b_pad * OUT_DIM)

    out = pl.pallas_call(
        _make_kernel(bb),
        out_shape=jax.ShapeDtypeStruct((b_pad, OUT_DIM), jnp.float32),
        grid_spec=pltpu.PrefetchScalarGridSpec(
            num_scalar_prefetch=0,
            grid=(n_blocks,),
            in_specs=[
                pl.BlockSpec((m, EMB_DIM), lambda i: (i, 0)),
                # Constant-index-map weight/bias operands: Pallas skips the
                # re-DMA when the block index doesn't change across steps.
                pl.BlockSpec(w1_flat.shape, lambda i: (0, 0)),
                pl.BlockSpec(wr_flat.shape, lambda i: (0, 0, 0)),
                pl.BlockSpec(b.shape, lambda i: (0, 0)),
            ],
            out_specs=pl.BlockSpec((bb, OUT_DIM), lambda i: (i, 0)),
        ),
        compiler_params=pltpu.CompilerParams(
            dimension_semantics=("parallel",)),
        cost_estimate=pl.CostEstimate(
            flops=flops, transcendentals=0, bytes_accessed=bytes_accessed),
    )(x, w1_flat, wr_flat, b)
    return out[:B]


# -------- pure-JAX reference for verification --------
def _reference(sent, emb_weight, w1, wr, biases):
    x = jnp.take(emb_weight, sent, axis=0).astype(jnp.float32)   # (B, L, E)
    P = KERNEL_SIZE // 2
    feats = []
    h = x
    for layer in range(NUM_LAYERS):
        w = w1 if layer == 0 else wr[layer - 1]                  # (K, Cin, Cout)
        bvec = biases[layer]
        hp = jnp.pad(h, ((0, 0), (P, P), (0, 0)))
        acc = jnp.zeros((h.shape[0], h.shape[1], w.shape[2]), jnp.float32)
        for k in range(KERNEL_SIZE):
            acc = acc + jnp.einsum('blc,cd->bld', hp[:, k:k + h.shape[1], :], w[k],
                                   precision=lax.Precision.HIGHEST)
        h = jnp.maximum(acc + bvec[None, None, :], 0.0)
        feats.append(jnp.max(h, axis=1))                         # (B, C)
    return jnp.concatenate(feats, axis=-1)


if __name__ == "__main__":
    key = jax.random.PRNGKey(0)
    k_emb, k_w1, k_wr, k_b, k_sent = jax.random.split(key, 5)

    emb_weight = jax.random.normal(k_emb, (VOCAB, EMB_DIM), jnp.float32) * 0.1
    # Conv weights kept in (K, Cin, Cout) layout (transpose of PyTorch's
    # (Cout, Cin, K) weight tensor; identical math).
    w1 = jax.random.normal(k_w1, (KERNEL_SIZE, EMB_DIM, CONV_SIZE), jnp.float32) * 0.1
    wr = jax.random.normal(k_wr, (NUM_LAYERS - 1, KERNEL_SIZE, CONV_SIZE, CONV_SIZE),
                           jnp.float32) * 0.1
    biases = jax.random.normal(k_b, (NUM_LAYERS, CONV_SIZE), jnp.float32) * 0.1

    sent = jax.random.randint(k_sent, (BATCH, SENT_LEN), 0, VOCAB, dtype=jnp.int32)

    encode = jax.jit(hiconvnet_encoder)
    out = jax.block_until_ready(encode(sent, emb_weight, w1, wr, biases))

    ref = _reference(sent, emb_weight, w1, wr, biases)
    assert out.shape == (BATCH, OUT_DIM), out.shape
    assert jnp.allclose(out, ref, atol=1e-4, rtol=1e-4), \
        float(jnp.max(jnp.abs(out - ref)))

    print("KERNEL_OK")
</pallas_src>

<mosaic_0001>
module attributes {stable_mosaic.version = 11 : i64} {
  func.func @kernel(%arg0: i32, %arg1: memref<128x16xf32, #tpu.memory_space<vmem>>, %arg2: memref<48x32xf32, #tpu.memory_space<vmem>>, %arg3: memref<3x96x32xf32, #tpu.memory_space<vmem>>, %arg4: memref<4x32xf32, #tpu.memory_space<vmem>>, %arg5: memref<8x128xf32, #tpu.memory_space<vmem>>) attributes {dimension_semantics = [#tpu.dimension_semantics<parallel>], iteration_bounds = array<i64: 2>, scalar_prefetch = 0 : i64, scratch_operands = 0 : i64, tpu.core_type = #tpu.core_type<tc>, window_params = [{transform_indices = @transform_0, window_bounds = array<i64: 128, 16>}, {pipeline_mode = #tpu.pipeline_mode<synchronous>, transform_indices = @transform_1, window_bounds = array<i64: 48, 32>}, {pipeline_mode = #tpu.pipeline_mode<synchronous>, transform_indices = @transform_2, window_bounds = array<i64: 3, 96, 32>}, {pipeline_mode = #tpu.pipeline_mode<synchronous>, transform_indices = @transform_3, window_bounds = array<i64: 4, 32>}, {transform_indices = @transform_4, window_bounds = array<i64: 8, 128>}]} {
    %0 = tpu.iota {dimensions = array<i32: 0>} : vector<128x1xi32>
    %c16_i32 = arith.constant 16 : i32
    %c0_i32 = arith.constant 0 : i32
    %1 = arith.cmpi eq, %c16_i32, %c0_i32 : i32
    %c1_i32 = arith.constant 1 : i32
    %2 = arith.select %1, %c1_i32, %c16_i32 : i32
    %3 = vector.broadcast %2 : i32 to vector<128x1xi32>
    %4 = arith.remsi %0, %3 : vector<128x1xi32>
    %c0_i32_0 = arith.constant 0 : i32
    %5 = vector.broadcast %c0_i32_0 : i32 to vector<128x1xi32>
    %6 = arith.cmpi ne, %4, %5 : vector<128x1xi32>
    %c0_i32_1 = arith.constant 0 : i32
    %7 = vector.broadcast %c0_i32_1 : i32 to vector<128x1xi32>
    %8 = arith.cmpi slt, %4, %7 : vector<128x1xi32>
    %c0_i32_2 = arith.constant 0 : i32
    %9 = arith.cmpi slt, %2, %c0_i32_2 : i32
    %10 = vector.broadcast %9 : i1 to vector<128x1xi1>
    %11 = vector.broadcast %10 : vector<128x1xi1> to vector<128x1xi1>
    %12 = arith.xori %8, %11 : vector<128x1xi1>
    %13 = arith.andi %12, %6 : vector<128x1xi1>
    %14 = vector.broadcast %2 : i32 to vector<128x1xi32>
    %15 = arith.addi %4, %14 : vector<128x1xi32>
    %16 = arith.select %13, %15, %4 : vector<128x1xi1>, vector<128x1xi32>
    %c1_i32_3 = arith.constant 1 : i32
    %17 = vector.broadcast %c1_i32_3 : i32 to vector<128x1xi32>
    %18 = arith.cmpi sge, %16, %17 : vector<128x1xi32>
    %19 = arith.extui %18 : vector<128x1xi1> to vector<128x1xi32>
    %20 = arith.sitofp %19 : vector<128x1xi32> to vector<128x1xf32>
    %c15_i32 = arith.constant 15 : i32
    %21 = vector.broadcast %c15_i32 : i32 to vector<128x1xi32>
    %22 = arith.cmpi slt, %16, %21 : vector<128x1xi32>
    %23 = arith.extui %22 : vector<128x1xi1> to vector<128x1xi32>
    %24 = arith.sitofp %23 : vector<128x1xi32> to vector<128x1xf32>
    %c0 = arith.constant 0 : index
    %c0_4 = arith.constant 0 : index
    %25 = vector.load %arg4[%c0, %c0_4] : memref<4x32xf32, #tpu.memory_space<vmem>>, vector<4x32xf32>
    %c0_5 = arith.constant 0 : index
    %c0_6 = arith.constant 0 : index
    %26 = vector.load %arg1[%c0_5, %c0_6] : memref<128x16xf32, #tpu.memory_space<vmem>>, vector<128x16xf32>
    %c0_7 = arith.constant 0 : index
    %c0_8 = arith.constant 0 : index
    %27 = vector.load %arg2[%c0_7, %c0_8] : memref<48x32xf32, #tpu.memory_space<vmem>>, vector<48x32xf32>
    %cst = arith.constant 0.000000e+00 : f32
    %28 = vector.broadcast %cst : f32 to vector<1x16xf32>
    %29 = vector.extract_strided_slice %26 {offsets = [0, 0], sizes = [127, 16], strides = [1, 1]} : vector<128x16xf32> to vector<127x16xf32>
    %30 = tpu.concatenate %28, %29 in 0 : vector<1x16xf32>, vector<127x16xf32> -> vector<128x16xf32>
    %31 = vector.broadcast %20 : vector<128x1xf32> to vector<128x16xf32>
    %32 = arith.mulf %30, %31 : vector<128x16xf32>
    %cst_9 = arith.constant 0.000000e+00 : f32
    %33 = vector.broadcast %cst_9 : f32 to vector<1x16xf32>
    %34 = vector.extract_strided_slice %26 {offsets = [1, 0], sizes = [127, 16], strides = [1, 1]} : vector<128x16xf32> to vector<127x16xf32>
    %35 = tpu.concatenate %34, %33 in 0 : vector<127x16xf32>, vector<1x16xf32> -> vector<128x16xf32>
    %36 = vector.broadcast %24 : vector<128x1xf32> to vector<128x16xf32>
    %37 = arith.mulf %35, %36 : vector<128x16xf32>
    %38 = tpu.concatenate %32, %26, %37 in 1 : vector<128x16xf32>, vector<128x16xf32>, vector<128x16xf32> -> vector<128x48xf32>
    %cst_10 = arith.constant dense<0.000000e+00> : vector<128x32xf32>
    %39 = tpu.matmul %38, %27, %cst_10 {dimension_numbers = #tpu.dot_dimension_numbers<[1], [0], [0], [1], [0, 0, 1, 1], [], []>} : vector<128x48xf32>, vector<48x32xf32>, vector<128x32xf32> -> vector<128x32xf32>
    %40 = vector.extract_strided_slice %25 {offsets = [0, 0], sizes = [1, 32], strides = [1, 1]} : vector<4x32xf32> to vector<1x32xf32>
    %41 = vector.shape_cast %40 : vector<1x32xf32> to vector<32xf32>
    %42 = vector.shape_cast %41 : vector<32xf32> to vector<1x32xf32>
    %43 = vector.broadcast %42 : vector<1x32xf32> to vector<128x32xf32>
    %44 = arith.addf %39, %43 : vector<128x32xf32>
    %cst_11 = arith.constant 0.000000e+00 : f32
    %45 = vector.broadcast %cst_11 : f32 to vector<128x32xf32>
    %46 = arith.maximumf %44, %45 : vector<128x32xf32>
    %47 = vector.shape_cast %46 : vector<128x32xf32> to vector<8x16x32xf32>
    %cst_12 = arith.constant dense<0xFF800000> : vector<8x32xf32>
    %48 = vector.multi_reduction <maximumf>, %47, %cst_12 [1] : vector<8x16x32xf32> to vector<8x32xf32>
    %c0_13 = arith.constant 0 : index
    %c0_14 = arith.constant 0 : index
    %c0_15 = arith.constant 0 : index
    %49 = vector.load %arg3[%c0_13, %c0_14, %c0_15] : memref<3x96x32xf32, #tpu.memory_space<vmem>>, vector<1x96x32xf32>
    %50 = vector.shape_cast %49 : vector<1x96x32xf32> to vector<96x32xf32>
    %cst_16 = arith.constant 0.000000e+00 : f32
    %51 = vector.broadcast %cst_16 : f32 to vector<1x32xf32>
    %52 = vector.extract_strided_slice %46 {offsets = [0, 0], sizes = [127, 32], strides = [1, 1]} : vector<128x32xf32> to vector<127x32xf32>
    %53 = tpu.concatenate %51, %52 in 0 : vector<1x32xf32>, vector<127x32xf32> -> vector<128x32xf32>
    %54 = vector.broadcast %20 : vector<128x1xf32> to vector<128x32xf32>
    %55 = arith.mulf %53, %54 : vector<128x32xf32>
    %cst_17 = arith.constant 0.000000e+00 : f32
    %56 = vector.broadcast %cst_17 : f32 to vector<1x32xf32>
    %57 = vector.extract_strided_slice %46 {offsets = [1, 0], sizes = [127, 32], strides = [1, 1]} : vector<128x32xf32> to vector<127x32xf32>
    %58 = tpu.concatenate %57, %56 in 0 : vector<127x32xf32>, vector<1x32xf32> -> vector<128x32xf32>
    %59 = vector.broadcast %24 : vector<128x1xf32> to vector<128x32xf32>
    %60 = arith.mulf %58, %59 : vector<128x32xf32>
    %61 = tpu.concatenate %55, %46, %60 in 1 : vector<128x32xf32>, vector<128x32xf32>, vector<128x32xf32> -> vector<128x96xf32>
    %cst_18 = arith.constant dense<0.000000e+00> : vector<128x32xf32>
    %62 = tpu.matmul %61, %50, %cst_18 {dimension_numbers = #tpu.dot_dimension_numbers<[1], [0], [0], [1], [0, 0, 1, 1], [], []>} : vector<128x96xf32>, vector<96x32xf32>, vector<128x32xf32> -> vector<128x32xf32>
    %63 = vector.extract_strided_slice %25 {offsets = [1, 0], sizes = [1, 32], strides = [1, 1]} : vector<4x32xf32> to vector<1x32xf32>
    %64 = vector.shape_cast %63 : vector<1x32xf32> to vector<32xf32>
    %65 = vector.shape_cast %64 : vector<32xf32> to vector<1x32xf32>
    %66 = vector.broadcast %65 : vector<1x32xf32> to vector<128x32xf32>
    %67 = arith.addf %62, %66 : vector<128x32xf32>
    %cst_19 = arith.constant 0.000000e+00 : f32
    %68 = vector.broadcast %cst_19 : f32 to vector<128x32xf32>
    %69 = arith.maximumf %67, %68 : vector<128x32xf32>
    %70 = vector.shape_cast %69 : vector<128x32xf32> to vector<8x16x32xf32>
    %cst_20 = arith.constant dense<0xFF800000> : vector<8x32xf32>
    %71 = vector.multi_reduction <maximumf>, %70, %cst_20 [1] : vector<8x16x32xf32> to vector<8x32xf32>
    %c1 = arith.constant 1 : index
    %c0_21 = arith.constant 0 : index
    %c0_22 = arith.constant 0 : index
    %72 = vector.load %arg3[%c1, %c0_21, %c0_22] : memref<3x96x32xf32, #tpu.memory_space<vmem>>, vector<1x96x32xf32>
    %73 = vector.shape_cast %72 : vector<1x96x32xf32> to vector<96x32xf32>
    %cst_23 = arith.constant 0.000000e+00 : f32
    %74 = vector.broadcast %cst_23 : f32 to vector<1x32xf32>
    %75 = vector.extract_strided_slice %69 {offsets = [0, 0], sizes = [127, 32], strides = [1, 1]} : vector<128x32xf32> to vector<127x32xf32>
    %76 = tpu.concatenate %74, %75 in 0 : vector<1x32xf32>, vector<127x32xf32> -> vector<128x32xf32>
    %77 = vector.broadcast %20 : vector<128x1xf32> to vector<128x32xf32>
    %78 = arith.mulf %76, %77 : vector<128x32xf32>
    %cst_24 = arith.constant 0.000000e+00 : f32
    %79 = vector.broadcast %cst_24 : f32 to vector<1x32xf32>
    %80 = vector.extract_strided_slice %69 {offsets = [1, 0], sizes = [127, 32], strides = [1, 1]} : vector<128x32xf32> to vector<127x32xf32>
    %81 = tpu.concatenate %80, %79 in 0 : vector<127x32xf32>, vector<1x32xf32> -> vector<128x32xf32>
    %82 = vector.broadcast %24 : vector<128x1xf32> to vector<128x32xf32>
    %83 = arith.mulf %81, %82 : vector<128x32xf32>
    %84 = tpu.concatenate %78, %69, %83 in 1 : vector<128x32xf32>, vector<128x32xf32>, vector<128x32xf32> -> vector<128x96xf32>
    %cst_25 = arith.constant dense<0.000000e+00> : vector<128x32xf32>
    %85 = tpu.matmul %84, %73, %cst_25 {dimension_numbers = #tpu.dot_dimension_numbers<[1], [0], [0], [1], [0, 0, 1, 1], [], []>} : vector<128x96xf32>, vector<96x32xf32>, vector<128x32xf32> -> vector<128x32xf32>
    %86 = vector.extract_strided_slice %25 {offsets = [2, 0], sizes = [1, 32], strides = [1, 1]} : vector<4x32xf32> to vector<1x32xf32>
    %87 = vector.shape_cast %86 : vector<1x32xf32> to vector<32xf32>
    %88 = vector.shape_cast %87 : vector<32xf32> to vector<1x32xf32>
    %89 = vector.broadcast %88 : vector<1x32xf32> to vector<128x32xf32>
    %90 = arith.addf %85, %89 : vector<128x32xf32>
    %cst_26 = arith.constant 0.000000e+00 : f32
    %91 = vector.broadcast %cst_26 : f32 to vector<128x32xf32>
    %92 = arith.maximumf %90, %91 : vector<128x32xf32>
    %93 = vector.shape_cast %92 : vector<128x32xf32> to vector<8x16x32xf32>
    %cst_27 = arith.constant dense<0xFF800000> : vector<8x32xf32>
    %94 = vector.multi_reduction <maximumf>, %93, %cst_27 [1] : vector<8x16x32xf32> to vector<8x32xf32>
    %c2 = arith.constant 2 : index
    %c0_28 = arith.constant 0 : index
    %c0_29 = arith.constant 0 : index
    %95 = vector.load %arg3[%c2, %c0_28, %c0_29] : memref<3x96x32xf32, #tpu.memory_space<vmem>>, vector<1x96x32xf32>
    %96 = vector.shape_cast %95 : vector<1x96x32xf32> to vector<96x32xf32>
    %cst_30 = arith.constant 0.000000e+00 : f32
    %97 = vector.broadcast %cst_30 : f32 to vector<1x32xf32>
    %98 = vector.extract_strided_slice %92 {offsets = [0, 0], sizes = [127, 32], strides = [1, 1]} : vector<128x32xf32> to vector<127x32xf32>
    %99 = tpu.concatenate %97, %98 in 0 : vector<1x32xf32>, vector<127x32xf32> -> vector<128x32xf32>
    %100 = vector.broadcast %20 : vector<128x1xf32> to vector<128x32xf32>
    %101 = arith.mulf %99, %100 : vector<128x32xf32>
    %cst_31 = arith.constant 0.000000e+00 : f32
    %102 = vector.broadcast %cst_31 : f32 to vector<1x32xf32>
    %103 = vector.extract_strided_slice %92 {offsets = [1, 0], sizes = [127, 32], strides = [1, 1]} : vector<128x32xf32> to vector<127x32xf32>
    %104 = tpu.concatenate %103, %102 in 0 : vector<127x32xf32>, vector<1x32xf32> -> vector<128x32xf32>
    %105 = vector.broadcast %24 : vector<128x1xf32> to vector<128x32xf32>
    %106 = arith.mulf %104, %105 : vector<128x32xf32>
    %107 = tpu.concatenate %101, %92, %106 in 1 : vector<128x32xf32>, vector<128x32xf32>, vector<128x32xf32> -> vector<128x96xf32>
    %cst_32 = arith.constant dense<0.000000e+00> : vector<128x32xf32>
    %108 = tpu.matmul %107, %96, %cst_32 {dimension_numbers = #tpu.dot_dimension_numbers<[1], [0], [0], [1], [0, 0, 1, 1], [], []>} : vector<128x96xf32>, vector<96x32xf32>, vector<128x32xf32> -> vector<128x32xf32>
    %109 = vector.extract_strided_slice %25 {offsets = [3, 0], sizes = [1, 32], strides = [1, 1]} : vector<4x32xf32> to vector<1x32xf32>
    %110 = vector.shape_cast %109 : vector<1x32xf32> to vector<32xf32>
    %111 = vector.shape_cast %110 : vector<32xf32> to vector<1x32xf32>
    %112 = vector.broadcast %111 : vector<1x32xf32> to vector<128x32xf32>
    %113 = arith.addf %108, %112 : vector<128x32xf32>
    %cst_33 = arith.constant 0.000000e+00 : f32
    %114 = vector.broadcast %cst_33 : f32 to vector<128x32xf32>
    %115 = arith.maximumf %113, %114 : vector<128x32xf32>
    %116 = vector.shape_cast %115 : vector<128x32xf32> to vector<8x16x32xf32>
    %cst_34 = arith.constant dense<0xFF800000> : vector<8x32xf32>
    %117 = vector.multi_reduction <maximumf>, %116, %cst_34 [1] : vector<8x16x32xf32> to vector<8x32xf32>
    %118 = tpu.concatenate %48, %71, %94, %117 in 1 : vector<8x32xf32>, vector<8x32xf32>, vector<8x32xf32>, vector<8x32xf32> -> vector<8x128xf32>
    %c0_35 = arith.constant 0 : index
    %c0_36 = arith.constant 0 : index
    %119 = vector.load %arg5[%c0_35, %c0_36] : memref<8x128xf32, #tpu.memory_space<vmem>>, vector<8x128xf32>
    tpu.vector_store %arg5[%c0_35, %c0_36], %118 {strides = array<i32>} : memref<8x128xf32, #tpu.memory_space<vmem>>, vector<8x128xf32>,
    return
  }
  func.func @transform_0(%arg0: i32) -> (i32, i32) {
    %c0_i32 = arith.constant 0 : i32
    %c0_i32_0 = arith.constant 0 : i32
    return %arg0, %c0_i32 : i32, i32
  }
  func.func @transform_1(%arg0: i32) -> (i32, i32) {
    %c0_i32 = arith.constant 0 : i32
    %c0_i32_0 = arith.constant 0 : i32
    %c0_i32_1 = arith.constant 0 : i32
    return %c0_i32, %c0_i32_0 : i32, i32
  }
  func.func @transform_2(%arg0: i32) -> (i32, i32, i32) {
    %c0_i32 = arith.constant 0 : i32
    %c0_i32_0 = arith.constant 0 : i32
    %c0_i32_1 = arith.constant 0 : i32
    %c0_i32_2 = arith.constant 0 : i32
    return %c0_i32, %c0_i32_0, %c0_i32_1 : i32, i32, i32
  }
  func.func @transform_3(%arg0: i32) -> (i32, i32) {
    %c0_i32 = arith.constant 0 : i32
    %c0_i32_0 = arith.constant 0 : i32
    %c0_i32_1 = arith.constant 0 : i32
    return %c0_i32, %c0_i32_0 : i32, i32
  }
  func.func @transform_4(%arg0: i32) -> (i32, i32) {
    %c0_i32 = arith.constant 0 : i32
    %c0_i32_0 = arith.constant 0 : i32
    return %arg0, %c0_i32 : i32, i32
  }
}

</mosaic_0001>

<llo_original>
// kernel: hiconvnet_encoder.1
$region0: #{hiconvnet_encoder.1}
  #allocation0 [shape = 'u32[]', space=smem, size = 0x4, offset = 0x4, fixed_abs, tag = 'smem constant byte address 0x4 - core index']
  #allocation1 [shape = 'u32[144,128]{1,0:T(1,128)}', space=vmem, size = 0x12000, scoped, tag = 'internal scratch']
  %s0 = inlined_call_operand.vmem [shape: f32[256,16], index: 0, kind: input, shape index: {}]
  %s1 = inlined_call_operand.vmem [shape: f32[48,32], index: 1, kind: input, shape index: {}]
  %s2 = inlined_call_operand.vmem [shape: f32[3,96,32], index: 2, kind: input, shape index: {}]
  %s3 = inlined_call_operand.vmem [shape: f32[4,32], index: 3, kind: input, shape index: {}]
  %s4 = inlined_call_operand.hbm [shape: f32[16,128], index: 4, kind: output, shape index: {}]
  %s5 = sld [smem:[#allocation0]]
  $region49: #{hiconvnet_encoder.1} parent=0
    _
  %s7 = ssub.s32 1, %s5
  %s8 = scalar_select 0, %s7, %s5
  $region1: #{hiconvnet_encoder.1} parent=0
    #allocation2 [shape = 'u8[8192]{0}', space=vmem, size = 0x2000, scoped, tag = 'output window, operand 0']
    #allocation3 [shape = 's32[2]{0}', space=sflag, size = 0x8, scoped, tag = 'scoped memory for hiconvnet_encoder.1']
    %9 = vsyncpa [#allocation3], 0
    %s10 = scalar_lea.sflag [#allocation3], 1
    %11 = vsyncpa %s10, 0
    loop: start=0, step=1, limit=4
    $region2: #{hiconvnet_encoder.1} parent=1 // loop_pre_header
      _
    $region3: #{hiconvnet_encoder.1} parent=1 // loop_header
      %s13 = sphi 0, %s17
      %p14 = scmp.ge.s32.totalorder %s13, 4
      %s23 = sphi 0, %s25
      %s26 = sphi 0, %s23
      %s27 = sphi 0, %s26
      %s43 = sphi 0, %s27
      %s47 = sphi 0, %s47
      %s49 = sphi 0, %s47
      %s50 = sphi 0, %s49
      %s64 = sphi 0, %s50
      %s68 = sphi 0, %s68
      %s70 = sphi 0, %s68
      %s71 = sphi 0, %s70
      %s85 = sphi 0, %s71
      %s89 = sphi 0, %s89
      %s91 = sphi 0, %s89
      %s92 = sphi 0, %s91
      %s106 = sphi 0, %s92
      %s112 = sphi 0, %s114
      %s115 = sphi 0, %s112
      %s116 = sphi 0, %s115
      %s132 = sphi 0, %s116
    $region4: #{hiconvnet_encoder.1} parent=1 // loop_header_branch
      %16 = sbr.rel (%p14) target = $region8
    $region5: #{hiconvnet_encoder.1} parent=1 // loop_body
      %s18 = ssub.s32 %s13, 1
      %s19 = ssub.s32 %s13, 2
      %s20 = sadd.s32 %s13, 1
      %s21 = ssub.s32 %s13, %s20
      %p22 = scmp.eq.s32.totalorder %s21, 0
      %s24 = sadd.s32 %s23, 1
      %s25 = scalar_select %p22, %s23, %s24
      %p28 = pneg %p22
      %p29 = scmp.eq.s32.totalorder %s13, 1
      %p30 = por %p28, %p29
      %p31 = scmp.ne.s32.totalorder %s23, %s26
      %p32 = scmp.eq.s32.totalorder %s13, 0
      %p33 = por %p31, %p32
      %p34 = scmp.ne.s32.totalorder %s23, %s26
      %p35 = scmp.eq.s32.totalorder %s18, 1
      %p36 = por %p34, %p35
      %p37 = scmp.ne.s32.totalorder %s26, %s27
      %p38 = scmp.eq.s32.totalorder %s18, 0
      %p39 = por %p37, %p38
      %p40 = scmp.ne.s32.totalorder %s26, %s27
      %p41 = scmp.eq.s32.totalorder %s19, 1
      %p42 = por %p40, %p41
      %p44 = scmp.ne.s32.totalorder %s27, %s43
      %p45 = scmp.eq.s32.totalorder %s19, 0
      %p46 = por %p44, %p45
      %s48 = sadd.s32 %s47, 1
      %p51 = scmp.eq.s32.totalorder %s13, 1
      %p52 = scmp.ne.s32.totalorder %s47, %s49
      %p53 = scmp.eq.s32.totalorder %s13, 0
      %p54 = por %p52, %p53
      %p55 = scmp.ne.s32.totalorder %s47, %s49
      %p56 = scmp.eq.s32.totalorder %s18, 1
      %p57 = por %p55, %p56
      %p58 = scmp.ne.s32.totalorder %s49, %s50
      %p59 = scmp.eq.s32.totalorder %s18, 0
      %p60 = por %p58, %p59
      %p61 = scmp.ne.s32.totalorder %s49, %s50
      %p62 = scmp.eq.s32.totalorder %s19, 1
      %p63 = por %p61, %p62
      %p65 = scmp.ne.s32.totalorder %s50, %s64
      %p66 = scmp.eq.s32.totalorder %s19, 0
      %p67 = por %p65, %p66
      %s69 = sadd.s32 %s68, 1
      %p72 = scmp.eq.s32.totalorder %s13, 1
      %p73 = scmp.ne.s32.totalorder %s68, %s70
      %p74 = scmp.eq.s32.totalorder %s13, 0
      %p75 = por %p73, %p74
      %p76 = scmp.ne.s32.totalorder %s68, %s70
      %p77 = scmp.eq.s32.totalorder %s18, 1
      %p78 = por %p76, %p77
      %p79 = scmp.ne.s32.totalorder %s70, %s71
      %p80 = scmp.eq.s32.totalorder %s18, 0
      %p81 = por %p79, %p80
      %p82 = scmp.ne.s32.totalorder %s70, %s71
      %p83 = scmp.eq.s32.totalorder %s19, 1
      %p84 = por %p82, %p83
      %p86 = scmp.ne.s32.totalorder %s71, %s85
      %p87 = scmp.eq.s32.totalorder %s19, 0
      %p88 = por %p86, %p87
      %s90 = sadd.s32 %s89, 1
      %p93 = scmp.eq.s32.totalorder %s13, 1
      %p94 = scmp.ne.s32.totalorder %s89, %s91
      %p95 = scmp.eq.s32.totalorder %s13, 0
      %p96 = por %p94, %p95
      %p97 = scmp.ne.s32.totalorder %s89, %s91
      %p98 = scmp.eq.s32.totalorder %s18, 1
      %p99 = por %p97, %p98
      %p100 = scmp.ne.s32.totalorder %s91, %s92
      %p101 = scmp.eq.s32.totalorder %s18, 0
      %p102 = por %p100, %p101
      %p103 = scmp.ne.s32.totalorder %s91, %s92
      %p104 = scmp.eq.s32.totalorder %s19, 1
      %p105 = por %p103, %p104
      %p107 = scmp.ne.s32.totalorder %s92, %s106
      %p108 = scmp.eq.s32.totalorder %s19, 0
      %p109 = por %p107, %p108
      %s110 = ssub.s32 %s13, %s20
      %p111 = scmp.eq.s32.totalorder %s110, 0
      %s113 = sadd.s32 %s112, 1
      %s114 = scalar_select %p111, %s112, %s113
      %p117 = pneg %p111
      %p118 = scmp.eq.s32.totalorder %s13, 1
      %p119 = por %p117, %p118
      %p120 = scmp.ne.s32.totalorder %s112, %s115
      %p121 = scmp.eq.s32.totalorder %s13, 0
      %p122 = por %p120, %p121
      %p123 = scmp.ne.s32.totalorder %s112, %s115
      %p124 = scmp.eq.s32.totalorder %s18, 1
      %p125 = por %p123, %p124
      %p126 = scmp.ne.s32.totalorder %s115, %s116
      %p127 = scmp.eq.s32.totalorder %s18, 0
      %p128 = por %p126, %p127
      %p129 = scmp.ne.s32.totalorder %s115, %s116
      %p130 = scmp.eq.s32.totalorder %s19, 1
      %p131 = por %p129, %p130
      %p133 = scmp.ne.s32.totalorder %s116, %s132
      %p134 = scmp.eq.s32.totalorder %s19, 0
      %p135 = por %p133, %p134
      %p136 = scmp.le.s32.totalorder 1, %s13
      %p137 = scmp.lt.s32.totalorder %s13, 3
      %p138 = pnand %p136, %p137
      %p139 = pneg %p138
      // Predicated region
      $region9: #{hiconvnet_encoder.1} parent=5 // pred_check
        _
      $region10: #{hiconvnet_encoder.1} parent=5 // pred_check_branch
        %141 = sbr.rel (%p138) target = $region12
      $region11: #{hiconvnet_encoder.1} parent=5 // pred_region
        %s142 = ssub.s32 %s13, 1
        // Predicated region
        $region13: #{hiconvnet_encoder.1} parent=11 // pred_check
          %p143 = pneg %p60
        $region14: #{hiconvnet_encoder.1} parent=11 // pred_check_branch
          %145 = sbr.rel (%p143) target = $region16
        $region15: #{hiconvnet_encoder.1} parent=11 // pred_region
          _
        $region16: #{hiconvnet_encoder.1} parent=11 // pred_fallthru
          _
        // Predicated region
        $region17: #{hiconvnet_encoder.1} parent=11 // pred_check
          %p146 = pneg %p81
        $region18: #{hiconvnet_encoder.1} parent=11 // pred_check_branch
          %148 = sbr.rel (%p146) target = $region20
        $region19: #{hiconvnet_encoder.1} parent=11 // pred_region
          _
        $region20: #{hiconvnet_encoder.1} parent=11 // pred_fallthru
          _
        // Predicated region
        $region21: #{hiconvnet_encoder.1} parent=11 // pred_check
          %p149 = pneg %p102
        $region22: #{hiconvnet_encoder.1} parent=11 // pred_check_branch
          %151 = sbr.rel (%p149) target = $region24
        $region23: #{hiconvnet_encoder.1} parent=11 // pred_region
          _
        $region24: #{hiconvnet_encoder.1} parent=11 // pred_fallthru
          _
      $region12: #{hiconvnet_encoder.1} parent=5 // pred_fallthru
        _
      %p152 = scmp.lt.s32.totalorder %s13, 2
      // Predicated region
      $region25: #{hiconvnet_encoder.1} parent=5 // pred_check
        %p153 = pneg %p152
      $region26: #{hiconvnet_encoder.1} parent=5 // pred_check_branch
        %155 = sbr.rel (%p153) target = $region28
      $region27: #{hiconvnet_encoder.1} parent=5 // pred_region
        // Predicated region
        $region29: #{hiconvnet_encoder.1} parent=27 // pred_check
          %p156 = pneg %p33
        $region30: #{hiconvnet_encoder.1} parent=27 // pred_check_branch
          %158 = sbr.rel (%p156) target = $region32
        $region31: #{hiconvnet_encoder.1} parent=27 // pred_region
          %s159 = smul.u32 16, %s13
          %p160 = scmp.lt.s32.totalorder %s159, 31
          %s161 = scalar_select %p160, %s159, 31
          %s162 = smul.addr %s161, 8
          %s163 = scalar_lea.vmem %s0, %s162
          %s164 = smul.u32 16, %s13
        $region32: #{hiconvnet_encoder.1} parent=27 // pred_fallthru
          _
      $region28: #{hiconvnet_encoder.1} parent=5 // pred_fallthru
        _
      %p165 = scmp.le.s32.totalorder 1, %s13
      %p166 = scmp.lt.s32.totalorder %s13, 3
      %p167 = pnand %p165, %p166
      %p168 = pneg %p167
      // Predicated region
      $region33: #{hiconvnet_encoder.1} parent=5 // pred_check
        _
      $region34: #{hiconvnet_encoder.1} parent=5 // pred_check_branch
        %170 = sbr.rel (%p167) target = $region36
      $region35: #{hiconvnet_encoder.1} parent=5 // pred_region
        %s171 = ssub.s32 %s13, 1
        %s172 = smul.u32 16, %s18
        %p173 = scmp.lt.s32.totalorder %s172, 31
        %s174 = scalar_select %p173, %s172, 31
        %s175 = smul.addr %s174, 8
        %s176 = scalar_lea.vmem %s0, %s175
        %p177 = pneg %p39
        %p178 = pneg %p36
        %p179 = pneg %p60
        %p180 = pneg %p57
        %p181 = pneg %p81
        %p182 = pneg %p78
        %p183 = pneg %p102
        %p184 = pneg %p99
        %p185 = pneg %p128
        %p186 = pneg %p125
        %s187 = sand.u32 %s115, 1
        %s188 = scalar_lea.sflag [#allocation3], %s187
        %s189 = sand.u32 %s115, 1
        %s190 = smul.addr %s189, 8
        %s191 = scalar_lea.vmem [#allocation2], %s190
        %s192 = smul.u32 16, %s18
        %p193 = scmp.lt.s32.totalorder %s192, 31
        %s194 = scalar_select %p193, %s192, 31
        %s195 = smul.addr %s194, 8
        %s196 = scalar_lea.vmem %s0, %s195
        %s197 = smul.u32 16, %s18
        %v198 = vlaneseq
        %v199 = vshrl.u32 %v198, 7
        %v200 = vadd.s32 %v199, 8
        %v201 = vadd.s32 %v199, 16
        %v202 = vadd.s32 %v199, 24
        %v203 = vadd.s32 %v199, 32
        %v204 = vadd.s32 %v199, 40
        %v205 = vadd.s32 %v199, 48
        %v206 = vadd.s32 %v199, 56
        %v207 = vadd.s32 %v199, 64
        %v208 = vadd.s32 %v199, 72
        %v209 = vadd.s32 %v199, 80
        %v210 = vadd.s32 %v199, 88
        %v211 = vadd.s32 %v199, 96
        %v212 = vadd.s32 %v199, 104
        %v213 = vadd.s32 %v199, 112
        %v214 = vadd.s32 %v199, 120
        %vm215 = vcmp.lt.s32.totalorder %v199, 0
        %v216 = vsub.s32 0, %v199
        %v217 = vsel %vm215, %v216, %v199
        %v218 = vshrl.u32 %v217, 4
        %v219 = vand.u32 %v217, 15
        %v220 = vsub.s32 0, %v219
        %v221 = vsel %vm215, %v220, %v219
        %vm222 = vcmp.lt.s32.totalorder %v200, 0
        %v223 = vsub.s32 0, %v200
        %v224 = vsel %vm222, %v223, %v200
        %v225 = vshrl.u32 %v224, 4
        %v226 = vand.u32 %v224, 15
        %v227 = vsub.s32 0, %v226
        %v228 = vsel %vm222, %v227, %v226
        %vm229 = vcmp.lt.s32.totalorder %v201, 0
        %v230 = vsub.s32 0, %v201
        %v231 = vsel %vm229, %v230, %v201
        %v232 = vshrl.u32 %v231, 4
        %v233 = vand.u32 %v231, 15
        %v234 = vsub.s32 0, %v233
        %v235 = vsel %vm229, %v234, %v233
        %vm236 = vcmp.lt.s32.totalorder %v202, 0
        %v237 = vsub.s32 0, %v202
        %v238 = vsel %vm236, %v237, %v202
        %v239 = vshrl.u32 %v238, 4
        %v240 = vand.u32 %v238, 15
        %v241 = vsub.s32 0, %v240
        %v242 = vsel %vm236, %v241, %v240
        %vm243 = vcmp.lt.s32.totalorder %v203, 0
        %v244 = vsub.s32 0, %v203
        %v245 = vsel %vm243, %v244, %v203
        %v246 = vshrl.u32 %v245, 4
        %v247 = vand.u32 %v245, 15
        %v248 = vsub.s32 0, %v247
        %v249 = vsel %vm243, %v248, %v247
        %vm250 = vcmp.lt.s32.totalorder %v204, 0
        %v251 = vsub.s32 0, %v204
        %v252 = vsel %vm250, %v251, %v204
        %v253 = vshrl.u32 %v252, 4
        %v254 = vand.u32 %v252, 15
        %v255 = vsub.s32 0, %v254
        %v256 = vsel %vm250, %v255, %v254
        %vm257 = vcmp.lt.s32.totalorder %v205, 0
        %v258 = vsub.s32 0, %v205
        %v259 = vsel %vm257, %v258, %v205
        %v260 = vshrl.u32 %v259, 4
        %v261 = vand.u32 %v259, 15
        %v262 = vsub.s32 0, %v261
        %v263 = vsel %vm257, %v262, %v261
        %vm264 = vcmp.lt.s32.totalorder %v206, 0
        %v265 = vsub.s32 0, %v206
        %v266 = vsel %vm264, %v265, %v206
        %v267 = vshrl.u32 %v266, 4
        %v268 = vand.u32 %v266, 15
        %v269 = vsub.s32 0, %v268
        %v270 = vsel %vm264, %v269, %v268
        %vm271 = vcmp.lt.s32.totalorder %v207, 0
        %v272 = vsub.s32 0, %v207
        %v273 = vsel %vm271, %v272, %v207
        %v274 = vshrl.u32 %v273, 4
        %v275 = vand.u32 %v273, 15
        %v276 = vsub.s32 0, %v275
        %v277 = vsel %vm271, %v276, %v275
        %vm278 = vcmp.lt.s32.totalorder %v208, 0
        %v279 = vsub.s32 0, %v208
        %v280 = vsel %vm278, %v279, %v208
        %v281 = vshrl.u32 %v280, 4
        %v282 = vand.u32 %v280, 15
        %v283 = vsub.s32 0, %v282
        %v284 = vsel %vm278, %v283, %v282
        %vm285 = vcmp.lt.s32.totalorder %v209, 0
        %v286 = vsub.s32 0, %v209
        %v287 = vsel %vm285, %v286, %v209
        %v288 = vshrl.u32 %v287, 4
        %v289 = vand.u32 %v287, 15
        %v290 = vsub.s32 0, %v289
        %v291 = vsel %vm285, %v290, %v289
        %vm292 = vcmp.lt.s32.totalorder %v210, 0
        %v293 = vsub.s32 0, %v210
        %v294 = vsel %vm292, %v293, %v210
        %v295 = vshrl.u32 %v294, 4
        %v296 = vand.u32 %v294, 15
        %v297 = vsub.s32 0, %v296
        %v298 = vsel %vm292, %v297, %v296
        %vm299 = vcmp.lt.s32.totalorder %v211, 0
        %v300 = vsub.s32 0, %v211
        %v301 = vsel %vm299, %v300, %v211
        %v302 = vshrl.u32 %v301, 4
        %v303 = vand.u32 %v301, 15
        %v304 = vsub.s32 0, %v303
        %v305 = vsel %vm299, %v304, %v303
        %vm306 = vcmp.lt.s32.totalorder %v212, 0
        %v307 = vsub.s32 0, %v212
        %v308 = vsel %vm306, %v307, %v212
        %v309 = vshrl.u32 %v308, 4
        %v310 = vand.u32 %v308, 15
        %v311 = vsub.s32 0, %v310
        %v312 = vsel %vm306, %v311, %v310
        %vm313 = vcmp.lt.s32.totalorder %v213, 0
        %v314 = vsub.s32 0, %v213
        %v315 = vsel %vm313, %v314, %v213
        %v316 = vshrl.u32 %v315, 4
        %v317 = vand.u32 %v315, 15
        %v318 = vsub.s32 0, %v317
        %v319 = vsel %vm313, %v318, %v317
        %vm320 = vcmp.lt.s32.totalorder %v214, 0
        %v321 = vsub.s32 0, %v214
        %v322 = vsel %vm320, %v321, %v214
        %v323 = vshrl.u32 %v322, 4
        %v324 = vand.u32 %v322, 15
        %v325 = vsub.s32 0, %v324
        %v326 = vsel %vm320, %v325, %v324
        %vm327 = vcmp.ne.s32.totalorder %v221, 0
        %vm328 = vcmp.ne.s32.totalorder %v228, 0
        %vm329 = vcmp.ne.s32.totalorder %v235, 0
        %vm330 = vcmp.ne.s32.totalorder %v242, 0
        %vm331 = vcmp.ne.s32.totalorder %v249, 0
        %vm332 = vcmp.ne.s32.totalorder %v256, 0
        %vm333 = vcmp.ne.s32.totalorder %v263, 0
        %vm334 = vcmp.ne.s32.totalorder %v270, 0
        %vm335 = vcmp.ne.s32.totalorder %v277, 0
        %vm336 = vcmp.ne.s32.totalorder %v284, 0
        %vm337 = vcmp.ne.s32.totalorder %v291, 0
        %vm338 = vcmp.ne.s32.totalorder %v298, 0
        %vm339 = vcmp.ne.s32.totalorder %v305, 0
        %vm340 = vcmp.ne.s32.totalorder %v312, 0
        %vm341 = vcmp.ne.s32.totalorder %v319, 0
        %vm342 = vcmp.ne.s32.totalorder %v326, 0
        %vm343 = vcmp.lt.s32.totalorder %v221, 0
        %vm344 = vcmp.lt.s32.totalorder %v228, 0
        %vm345 = vcmp.lt.s32.totalorder %v235, 0
        %vm346 = vcmp.lt.s32.totalorder %v242, 0
        %vm347 = vcmp.lt.s32.totalorder %v249, 0
        %vm348 = vcmp.lt.s32.totalorder %v256, 0
        %vm349 = vcmp.lt.s32.totalorder %v263, 0
        %vm350 = vcmp.lt.s32.totalorder %v270, 0
        %vm351 = vcmp.lt.s32.totalorder %v277, 0
        %vm352 = vcmp.lt.s32.totalorder %v284, 0
        %vm353 = vcmp.lt.s32.totalorder %v291, 0
        %vm354 = vcmp.lt.s32.totalorder %v298, 0
        %vm355 = vcmp.lt.s32.totalorder %v305, 0
        %vm356 = vcmp.lt.s32.totalorder %v312, 0
        %vm357 = vcmp.lt.s32.totalorder %v319, 0
        %vm358 = vcmp.lt.s32.totalorder %v326, 0
        %vm359 = vmand %vm343, %vm327
        %vm360 = vmand %vm344, %vm328
        %vm361 = vmand %vm345, %vm329
        %vm362 = vmand %vm346, %vm330
        %vm363 = vmand %vm347, %vm331
        %vm364 = vmand %vm348, %vm332
        %vm365 = vmand %vm349, %vm333
        %vm366 = vmand %vm350, %vm334
        %vm367 = vmand %vm351, %vm335
        %vm368 = vmand %vm352, %vm336
        %vm369 = vmand %vm353, %vm337
        %vm370 = vmand %vm354, %vm338
        %vm371 = vmand %vm355, %vm339
        %vm372 = vmand %vm356, %vm340
        %vm373 = vmand %vm357, %vm341
        %vm374 = vmand %vm358, %vm342
        %v375 = vadd.s32 %v221, 16
        %v376 = vadd.s32 %v228, 16
        %v377 = vadd.s32 %v235, 16
        %v378 = vadd.s32 %v242, 16
        %v379 = vadd.s32 %v249, 16
        %v380 = vadd.s32 %v256, 16
        %v381 = vadd.s32 %v263, 16
        %v382 = vadd.s32 %v270, 16
        %v383 = vadd.s32 %v277, 16
        %v384 = vadd.s32 %v284, 16
        %v385 = vadd.s32 %v291, 16
        %v386 = vadd.s32 %v298, 16
        %v387 = vadd.s32 %v305, 16
        %v388 = vadd.s32 %v312, 16
        %v389 = vadd.s32 %v319, 16
        %v390 = vadd.s32 %v326, 16
        %v391 = vsel %vm359, %v375, %v221
        %v392 = vsel %vm360, %v376, %v228
        %v393 = vsel %vm361, %v377, %v235
        %v394 = vsel %vm362, %v378, %v242
        %v395 = vsel %vm363, %v379, %v249
        %v396 = vsel %vm364, %v380, %v256
        %v397 = vsel %vm365, %v381, %v263
        %v398 = vsel %vm366, %v382, %v270
        %v399 = vsel %vm367, %v383, %v277
        %v400 = vsel %vm368, %v384, %v284
        %v401 = vsel %vm369, %v385, %v291
        %v402 = vsel %vm370, %v386, %v298
        %v403 = vsel %vm371, %v387, %v305
        %v404 = vsel %vm372, %v388, %v312
        %v405 = vsel %vm373, %v389, %v319
        %v406 = vsel %vm374, %v390, %v326
        %vm407 = vcmp.ge.s32.totalorder %v391, 1
        %vm408 = vcmp.ge.s32.totalorder %v392, 1
        %vm409 = vcmp.ge.s32.totalorder %v393, 1
        %vm410 = vcmp.ge.s32.totalorder %v394, 1
        %vm411 = vcmp.ge.s32.totalorder %v395, 1
        %vm412 = vcmp.ge.s32.totalorder %v396, 1
        %vm413 = vcmp.ge.s32.totalorder %v397, 1
        %vm414 = vcmp.ge.s32.totalorder %v398, 1
        %vm415 = vcmp.ge.s32.totalorder %v399, 1
        %vm416 = vcmp.ge.s32.totalorder %v400, 1
        %vm417 = vcmp.ge.s32.totalorder %v401, 1
        %vm418 = vcmp.ge.s32.totalorder %v402, 1
        %vm419 = vcmp.ge.s32.totalorder %v403, 1
        %vm420 = vcmp.ge.s32.totalorder %v404, 1
        %vm421 = vcmp.ge.s32.totalorder %v405, 1
        %vm422 = vcmp.ge.s32.totalorder %v406, 1
        %v423 = vsel %vm407, 1, 0
        %v424 = vsel %vm408, 1, 0
        %v425 = vsel %vm409, 1, 0
        %v426 = vsel %vm410, 1, 0
        %v427 = vsel %vm411, 1, 0
        %v428 = vsel %vm412, 1, 0
        %v429 = vsel %vm413, 1, 0
        %v430 = vsel %vm414, 1, 0
        %v431 = vsel %vm415, 1, 0
        %v432 = vsel %vm416, 1, 0
        %v433 = vsel %vm417, 1, 0
        %v434 = vsel %vm418, 1, 0
        %v435 = vsel %vm419, 1, 0
        %v436 = vsel %vm420, 1, 0
        %v437 = vsel %vm421, 1, 0
        %v438 = vsel %vm422, 1, 0
        %v439 = vcvt.s32.f32 %v423
        %v440 = vcvt.s32.f32 %v424
        %v441 = vcvt.s32.f32 %v425
        %v442 = vcvt.s32.f32 %v426
        %v443 = vcvt.s32.f32 %v427
        %v444 = vcvt.s32.f32 %v428
        %v445 = vcvt.s32.f32 %v429
        %v446 = vcvt.s32.f32 %v430
        %v447 = vcvt.s32.f32 %v431
        %v448 = vcvt.s32.f32 %v432
        %v449 = vcvt.s32.f32 %v433
        %v450 = vcvt.s32.f32 %v434
        %v451 = vcvt.s32.f32 %v435
        %v452 = vcvt.s32.f32 %v436
        %v453 = vcvt.s32.f32 %v437
        %v454 = vcvt.s32.f32 %v438
        %vm455 = vcmp.lt.s32.totalorder %v391, 15
        %vm456 = vcmp.lt.s32.totalorder %v392, 15
        %vm457 = vcmp.lt.s32.totalorder %v393, 15
        %vm458 = vcmp.lt.s32.totalorder %v394, 15
        %vm459 = vcmp.lt.s32.totalorder %v395, 15
        %vm460 = vcmp.lt.s32.totalorder %v396, 15
        %vm461 = vcmp.lt.s32.totalorder %v397, 15
        %vm462 = vcmp.lt.s32.totalorder %v398, 15
        %vm463 = vcmp.lt.s32.totalorder %v399, 15
        %vm464 = vcmp.lt.s32.totalorder %v400, 15
        %vm465 = vcmp.lt.s32.totalorder %v401, 15
        %vm466 = vcmp.lt.s32.totalorder %v402, 15
        %vm467 = vcmp.lt.s32.totalorder %v403, 15
        %vm468 = vcmp.lt.s32.totalorder %v404, 15
        %vm469 = vcmp.lt.s32.totalorder %v405, 15
        %vm470 = vcmp.lt.s32.totalorder %v406, 15
        %v471 = vsel %vm455, 1, 0
        %v472 = vsel %vm456, 1, 0
        %v473 = vsel %vm457, 1, 0
        %v474 = vsel %vm458, 1, 0
        %v475 = vsel %vm459, 1, 0
        %v476 = vsel %vm460, 1, 0
        %v477 = vsel %vm461, 1, 0
        %v478 = vsel %vm462, 1, 0
        %v479 = vsel %vm463, 1, 0
        %v480 = vsel %vm464, 1, 0
        %v481 = vsel %vm465, 1, 0
        %v482 = vsel %vm466, 1, 0
        %v483 = vsel %vm467, 1, 0
        %v484 = vsel %vm468, 1, 0
        %v485 = vsel %vm469, 1, 0
        %v486 = vsel %vm470, 1, 0
        %v487 = vcvt.s32.f32 %v471
        %v488 = vcvt.s32.f32 %v472
        %v489 = vcvt.s32.f32 %v473
        %v490 = vcvt.s32.f32 %v474
        %v491 = vcvt.s32.f32 %v475
        %v492 = vcvt.s32.f32 %v476
        %v493 = vcvt.s32.f32 %v477
        %v494 = vcvt.s32.f32 %v478
        %v495 = vcvt.s32.f32 %v479
        %v496 = vcvt.s32.f32 %v480
        %v497 = vcvt.s32.f32 %v481
        %v498 = vcvt.s32.f32 %v482
        %v499 = vcvt.s32.f32 %v483
        %v500 = vcvt.s32.f32 %v484
        %v501 = vcvt.s32.f32 %v485
        %v502 = vcvt.s32.f32 %v486
        %v503 = vld [vmem:[%s3] sm:$0xf]
        %v504 = vld [vmem:[%s196] sm:$0xff]
        %v505 = vld [vmem:[%s196 + $0x8] sm:$0xff]
        %v506 = vld [vmem:[%s196 + $0x10] sm:$0xff]
        %v507 = vld [vmem:[%s196 + $0x18] sm:$0xff]
        %v508 = vld [vmem:[%s196 + $0x20] sm:$0xff]
        %v509 = vld [vmem:[%s196 + $0x28] sm:$0xff]
        %v510 = vld [vmem:[%s196 + $0x30] sm:$0xff]
        %v511 = vld [vmem:[%s196 + $0x38] sm:$0xff]
        %v512 = vld [vmem:[%s196 + $0x40] sm:$0xff]
        %v513 = vld [vmem:[%s196 + $0x48] sm:$0xff]
        %v514 = vld [vmem:[%s196 + $0x50] sm:$0xff]
        %v515 = vld [vmem:[%s196 + $0x58] sm:$0xff]
        %v516 = vld [vmem:[%s196 + $0x60] sm:$0xff]
        %v517 = vld [vmem:[%s196 + $0x68] sm:$0xff]
        %v518 = vld [vmem:[%s196 + $0x70] sm:$0xff]
        %v519 = vld [vmem:[%s196 + $0x78] sm:$0xff]
        %v520 = vld [vmem:[%s1] sm:$0xff]
        %v521 = vld [vmem:[%s1 + $0x8] sm:$0xff]
        %v522 = vld [vmem:[%s1 + $0x10] sm:$0xff]
        %v523 = vld [vmem:[%s1 + $0x18] sm:$0xff]
        %v524 = vld [vmem:[%s1 + $0x20] sm:$0xff]
        %v525 = vld [vmem:[%s1 + $0x28] sm:$0xff]
        %vm542 = vcmask 1040384
        %v543 = vrot.slane %v504, 7
        %v544 = vrot.slane %v505, 7
        %v545 = vsel %vm542, %v543, %v544
        %v546 = vrot.slane %v506, 7
        %v547 = vsel %vm542, %v544, %v546
        %v548 = vrot.slane %v507, 7
        %v549 = vsel %vm542, %v546, %v548
        %v550 = vrot.slane %v508, 7
        %v551 = vsel %vm542, %v548, %v550
        %v552 = vrot.slane %v509, 7
        %v553 = vsel %vm542, %v550, %v552
        %v554 = vrot.slane %v510, 7
        %v555 = vsel %vm542, %v552, %v554
        %v556 = vrot.slane %v511, 7
        %v557 = vsel %vm542, %v554, %v556
        %v558 = vrot.slane %v512, 7
        %v559 = vsel %vm542, %v556, %v558
        %v560 = vrot.slane %v513, 7
        %v561 = vsel %vm542, %v558, %v560
        %v562 = vrot.slane %v514, 7
        %v563 = vsel %vm542, %v560, %v562
        %v564 = vrot.slane %v515, 7
        %v565 = vsel %vm542, %v562, %v564
        %v566 = vrot.slane %v516, 7
        %v567 = vsel %vm542, %v564, %v566
        %v568 = vrot.slane %v517, 7
        %v569 = vsel %vm542, %v566, %v568
        %v570 = vrot.slane %v518, 7
        %v571 = vsel %vm542, %v568, %v570
        %v572 = vrot.slane %v519, 7
        %v573 = vsel %vm542, %v570, %v572
        %v590 = vsel %vm542, 0.0, %v543
        %v591 = vmul.f32 %v590, %v439
        %v592 = vmul.f32 %v545, %v440
        %v593 = vmul.f32 %v547, %v441
        %v594 = vmul.f32 %v549, %v442
        %v595 = vmul.f32 %v551, %v443
        %v596 = vmul.f32 %v553, %v444
        %v597 = vmul.f32 %v555, %v445
        %v598 = vmul.f32 %v557, %v446
        %v599 = vmul.f32 %v559, %v447
        %v600 = vmul.f32 %v561, %v448
        %v601 = vmul.f32 %v563, %v449
        %v602 = vmul.f32 %v565, %v450
        %v603 = vmul.f32 %v567, %v451
        %v604 = vmul.f32 %v569, %v452
        %v605 = vmul.f32 %v571, %v453
        %v606 = vmul.f32 %v573, %v454
        %vm607 = vcmask 1046528
        %v608 = vrot.slane %v504, 1
        %v609 = vrot.slane %v505, 1
        %v610 = vsel %vm607, %v608, %v609
        %v611 = vrot.slane %v506, 1
        %v612 = vsel %vm607, %v609, %v611
        %v613 = vrot.slane %v507, 1
        %v614 = vsel %vm607, %v611, %v613
        %v615 = vrot.slane %v508, 1
        %v616 = vsel %vm607, %v613, %v615
        %v617 = vrot.slane %v509, 1
        %v618 = vsel %vm607, %v615, %v617
        %v619 = vrot.slane %v510, 1
        %v620 = vsel %vm607, %v617, %v619
        %v621 = vrot.slane %v511, 1
        %v622 = vsel %vm607, %v619, %v621
        %v623 = vrot.slane %v512, 1
        %v624 = vsel %vm607, %v621, %v623
        %v625 = vrot.slane %v513, 1
        %v626 = vsel %vm607, %v623, %v625
        %v627 = vrot.slane %v514, 1
        %v628 = vsel %vm607, %v625, %v627
        %v629 = vrot.slane %v515, 1
        %v630 = vsel %vm607, %v627, %v629
        %v631 = vrot.slane %v516, 1
        %v632 = vsel %vm607, %v629, %v631
        %v633 = vrot.slane %v517, 1
        %v634 = vsel %vm607, %v631, %v633
        %v635 = vrot.slane %v518, 1
        %v636 = vsel %vm607, %v633, %v635
        %v637 = vrot.slane %v519, 1
        %v638 = vsel %vm607, %v635, %v637
        %v655 = vsel %vm607, %v637, 0.0
        %v656 = vmul.f32 %v610, %v487
        %v657 = vmul.f32 %v612, %v488
        %v658 = vmul.f32 %v614, %v489
        %v659 = vmul.f32 %v616, %v490
        %v660 = vmul.f32 %v618, %v491
        %v661 = vmul.f32 %v620, %v492
        %v662 = vmul.f32 %v622, %v493
        %v663 = vmul.f32 %v624, %v494
        %v664 = vmul.f32 %v626, %v495
        %v665 = vmul.f32 %v628, %v496
        %v666 = vmul.f32 %v630, %v497
        %v667 = vmul.f32 %v632, %v498
        %v668 = vmul.f32 %v634, %v499
        %v669 = vmul.f32 %v636, %v500
        %v670 = vmul.f32 %v638, %v501
        %v671 = vmul.f32 %v655, %v502
        %672 = vrot.lane.b32.xlu0 %v504, 16
        %v673 = vpop.permute.xlu0 %672
        %674 = vrot.lane.b32.xlu0 %v505, 16
        %v675 = vpop.permute.xlu0 %674
        %676 = vrot.lane.b32.xlu0 %v506, 16
        %v677 = vpop.permute.xlu0 %676
        %678 = vrot.lane.b32.xlu0 %v507, 16
        %v679 = vpop.permute.xlu0 %678
        %680 = vrot.lane.b32.xlu0 %v508, 16
        %v681 = vpop.permute.xlu0 %680
        %682 = vrot.lane.b32.xlu0 %v509, 16
        %v683 = vpop.permute.xlu0 %682
        %684 = vrot.lane.b32.xlu0 %v510, 16
        %v685 = vpop.permute.xlu0 %684
        %686 = vrot.lane.b32.xlu0 %v511, 16
        %v687 = vpop.permute.xlu0 %686
        %688 = vrot.lane.b32.xlu0 %v512, 16
        %v689 = vpop.permute.xlu0 %688
        %690 = vrot.lane.b32.xlu0 %v513, 16
        %v691 = vpop.permute.xlu0 %690
        %692 = vrot.lane.b32.xlu0 %v514, 16
        %v693 = vpop.permute.xlu0 %692
        %694 = vrot.lane.b32.xlu0 %v515, 16
        %v695 = vpop.permute.xlu0 %694
        %696 = vrot.lane.b32.xlu0 %v516, 16
        %v697 = vpop.permute.xlu0 %696
        %698 = vrot.lane.b32.xlu0 %v517, 16
        %v699 = vpop.permute.xlu0 %698
        %700 = vrot.lane.b32.xlu0 %v518, 16
        %v701 = vpop.permute.xlu0 %700
        %702 = vrot.lane.b32.xlu0 %v519, 16
        %v703 = vpop.permute.xlu0 %702
        %736 = vrot.lane.b32.xlu0 %v656, 32
        %v737 = vpop.permute.xlu0 %736
        %738 = vrot.lane.b32.xlu0 %v657, 32
        %v739 = vpop.permute.xlu0 %738
        %740 = vrot.lane.b32.xlu0 %v658, 32
        %v741 = vpop.permute.xlu0 %740
        %742 = vrot.lane.b32.xlu0 %v659, 32
        %v743 = vpop.permute.xlu0 %742
        %744 = vrot.lane.b32.xlu0 %v660, 32
        %v745 = vpop.permute.xlu0 %744
        %746 = vrot.lane.b32.xlu0 %v661, 32
        %v747 = vpop.permute.xlu0 %746
        %748 = vrot.lane.b32.xlu0 %v662, 32
        %v749 = vpop.permute.xlu0 %748
        %750 = vrot.lane.b32.xlu0 %v663, 32
        %v751 = vpop.permute.xlu0 %750
        %752 = vrot.lane.b32.xlu0 %v664, 32
        %v753 = vpop.permute.xlu0 %752
        %754 = vrot.lane.b32.xlu0 %v665, 32
        %v755 = vpop.permute.xlu0 %754
        %756 = vrot.lane.b32.xlu0 %v666, 32
        %v757 = vpop.permute.xlu0 %756
        %758 = vrot.lane.b32.xlu0 %v667, 32
        %v759 = vpop.permute.xlu0 %758
        %760 = vrot.lane.b32.xlu0 %v668, 32
        %v761 = vpop.permute.xlu0 %760
        %762 = vrot.lane.b32.xlu0 %v669, 32
        %v763 = vpop.permute.xlu0 %762
        %764 = vrot.lane.b32.xlu0 %v670, 32
        %v765 = vpop.permute.xlu0 %764
        %766 = vrot.lane.b32.xlu0 %v671, 32
        %v767 = vpop.permute.xlu0 %766
        %vm784 = vcmask 130048
        %v785 = vsel %vm784, %v591, %v673
        %v786 = vsel %vm784, %v592, %v675
        %v787 = vsel %vm784, %v593, %v677
        %v788 = vsel %vm784, %v594, %v679
        %v789 = vsel %vm784, %v595, %v681
        %v790 = vsel %vm784, %v596, %v683
        %v791 = vsel %vm784, %v597, %v685
        %v792 = vsel %vm784, %v598, %v687
        %v793 = vsel %vm784, %v599, %v689
        %v794 = vsel %vm784, %v600, %v691
        %v795 = vsel %vm784, %v601, %v693
        %v796 = vsel %vm784, %v602, %v695
        %v797 = vsel %vm784, %v603, %v697
        %v798 = vsel %vm784, %v604, %v699
        %v799 = vsel %vm784, %v605, %v701
        %v800 = vsel %vm784, %v606, %v703
        %vm801 = vcmask 261120
        %v802 = vsel %vm801, %v785, %v737
        %v803 = vsel %vm801, %v786, %v739
        %v804 = vsel %vm801, %v787, %v741
        %v805 = vsel %vm801, %v788, %v743
        %v806 = vsel %vm801, %v789, %v745
        %v807 = vsel %vm801, %v790, %v747
        %v808 = vsel %vm801, %v791, %v749
        %v809 = vsel %vm801, %v792, %v751
        %v810 = vsel %vm801, %v793, %v753
        %v811 = vsel %vm801, %v794, %v755
        %v812 = vsel %vm801, %v795, %v757
        %v813 = vsel %vm801, %v796, %v759
        %v814 = vsel %vm801, %v797, %v761
        %v815 = vsel %vm801, %v798, %v763
        %v816 = vsel %vm801, %v799, %v765
        %v817 = vsel %vm801, %v800, %v767
        %v818 = vlaneseq
        %v819 = vshrl.u32 %v818, 7
        %v820 = vsub.s32 0, %v819
        %v821 = vrot.slane %v503, %v820
        %vm822 = vcmask 392192
        %v824 = vsel %vm822, %v802, 0
        %v827 = vsel %vm822, %v803, 0
        %v830 = vsel %vm822, %v804, 0
        %v833 = vsel %vm822, %v805, 0
        %v836 = vsel %vm822, %v806, 0
        %v839 = vsel %vm822, %v807, 0
        %v842 = vsel %vm822, %v808, 0
        %v845 = vsel %vm822, %v809, 0
        %v848 = vsel %vm822, %v810, 0
        %v851 = vsel %vm822, %v811, 0
        %v854 = vsel %vm822, %v812, 0
        %v857 = vsel %vm822, %v813, 0
        %v860 = vsel %vm822, %v814, 0
        %v863 = vsel %vm822, %v815, 0
        %v866 = vsel %vm822, %v816, 0
        %v869 = vsel %vm822, %v817, 0
        %871 = vmatprep.subr.mxu0 0.0
        %872 = vmatpush1.msra.mxu0 %v520
        %873 = vmatprep.subr.mxu0 0.0
        %874 = vmatpush1.msra.mxu0 %v521
        %875 = vmatprep.subr.mxu0 0.0
        %876 = vmatpush1.msra.mxu0 %v522
        %877 = vmatprep.subr.mxu0 0.0
        %878 = vmatpush1.msra.mxu0 %v523
        %879 = vmatprep.subr.mxu0 0.0
        %880 = vmatpush1.msra.mxu0 %v524
        %881 = vmatprep.subr.mxu0 0.0
        %882 = vmatpush1.msra.mxu0 %v525
        %883 = vmatprep.subr.mxu0 0.0
        %884 = vmatpush1.msra.mxu0 0.0
        %885 = vmatprep.subr.mxu0 0.0
        %886 = vmatpush1.msra.mxu0 0.0
        %887 = vmatprep.subr.mxu0 0.0
        %888 = vmatpush1.msra.mxu0 0.0
        %889 = vmatprep.subr.mxu0 0.0
        %890 = vmatpush1.msra.mxu0 0.0
        %891 = vmatprep.subr.mxu0 0.0
        %892 = vmatpush1.msra.mxu0 0.0
        %893 = vmatprep.subr.mxu0 0.0
        %894 = vmatpush1.msra.mxu0 0.0
        %895 = vmatprep.subr.mxu0 0.0
        %896 = vmatpush1.msra.mxu0 0.0
        %897 = vmatprep.subr.mxu0 0.0
        %898 = vmatpush1.msra.mxu0 0.0
        %899 = vmatprep.subr.mxu0 0.0
        %900 = vmatpush1.msra.mxu0 0.0
        %901 = vmatprep.subr.mxu0 0.0
        %902 = vmatpush1.msra.mxu0 0.0
        %903 = vmatprep.subr.mxu0 0.0
        %904 = vmatpush1.msra.mxu0 0.0
        %905 = vmatprep.subr.mxu0 0.0
        %906 = vmatpush1.msra.mxu0 0.0
        %907 = vmatprep.subr.mxu0 0.0
        %908 = vmatpush1.msra.mxu0 0.0
        %909 = vmatprep.subr.mxu0 0.0
        %910 = vmatpush1.msra.mxu0 0.0
        %911 = vmatprep.subr.mxu0 0.0
        %912 = vmatpush1.msra.mxu0 0.0
        %913 = vmatprep.subr.mxu0 0.0
        %914 = vmatpush1.msra.mxu0 0.0
        %915 = vmatprep.subr.mxu0 0.0
        %916 = vmatpush1.msra.mxu0 0.0
        %917 = vmatprep.subr.mxu0 0.0
        %918 = vmatpush1.msra.mxu0 0.0
        %919 = vmatprep.subr.mxu0 0.0
        %920 = vmatpush1.msra.mxu0 0.0
        %921 = vmatprep.subr.mxu0 0.0
        %922 = vmatpush1.msra.mxu0 0.0
        %923 = vmatprep.subr.mxu0 0.0
        %924 = vmatpush1.msra.mxu0 0.0
        %925 = vmatprep.subr.mxu0 0.0
        %926 = vmatpush1.msra.mxu0 0.0
        %927 = vmatprep.subr.mxu0 0.0
        %928 = vmatpush1.msra.mxu0 0.0
        %929 = vmatprep.subr.mxu0 0.0
        %930 = vmatpush1.msra.mxu0 0.0
        %931 = vmatprep.subr.mxu0 0.0
        %932 = vmatpush1.msra.mxu0 0.0
        %933 = vmatprep.subr.mxu0 0.0
        %934 = vmatpush1.msra.mxu0 0.0
        %935 = vmatprep.mubr.f32.mxu0 0.0
        %936 = vmatmul.mubr.f32.gmra.mrb[0].mxu0 %v824
        %v937 = vpop.f32.mrb[0].mxu0
        %v938 = vadd.f32 %v821, %v937
        %v939 = vpop.f32.mrb[0].mxu0
        %940 = vmatprep.mubr.f32.mxu0 0.0
        %941 = vmatmul.mubr.f32.gmra.mrb[0].mxu0 %v827
        %v942 = vpop.f32.mrb[0].mxu0
        %v943 = vadd.f32 %v821, %v942
        %v944 = vpop.f32.mrb[0].mxu0
        %945 = vmatprep.mubr.f32.mxu0 0.0
        %946 = vmatmul.mubr.f32.gmra.mrb[0].mxu0 %v830
        %v947 = vpop.f32.mrb[0].mxu0
        %v948 = vadd.f32 %v821, %v947
        %v949 = vpop.f32.mrb[0].mxu0
        %950 = vmatprep.mubr.f32.mxu0 0.0
        %951 = vmatmul.mubr.f32.gmra.mrb[0].mxu0 %v833
        %v952 = vpop.f32.mrb[0].mxu0
        %v953 = vadd.f32 %v821, %v952
        %v954 = vpop.f32.mrb[0].mxu0
        %955 = vmatprep.mubr.f32.mxu0 0.0
        %956 = vmatmul.mubr.f32.gmra.mrb[0].mxu0 %v836
        %v957 = vpop.f32.mrb[0].mxu0
        %v958 = vadd.f32 %v821, %v957
        %v959 = vpop.f32.mrb[0].mxu0
        %960 = vmatprep.mubr.f32.mxu0 0.0
        %961 = vmatmul.mubr.f32.gmra.mrb[0].mxu0 %v839
        %v962 = vpop.f32.mrb[0].mxu0
        %v963 = vadd.f32 %v821, %v962
        %v964 = vpop.f32.mrb[0].mxu0
        %965 = vmatprep.mubr.f32.mxu0 0.0
        %966 = vmatmul.mubr.f32.gmra.mrb[0].mxu0 %v842
        %v967 = vpop.f32.mrb[0].mxu0
        %v968 = vadd.f32 %v821, %v967
        %v969 = vpop.f32.mrb[0].mxu0
        %970 = vmatprep.mubr.f32.mxu0 0.0
        %971 = vmatmul.mubr.f32.gmra.mrb[0].mxu0 %v845
        %v972 = vpop.f32.mrb[0].mxu0
        %v973 = vadd.f32 %v821, %v972
        %v974 = vpop.f32.mrb[0].mxu0
        %975 = vmatprep.mubr.f32.mxu0 0.0
        %976 = vmatmul.mubr.f32.gmra.mrb[0].mxu0 %v848
        %v977 = vpop.f32.mrb[0].mxu0
        %v978 = vadd.f32 %v821, %v977
        %v979 = vpop.f32.mrb[0].mxu0
        %980 = vmatprep.mubr.f32.mxu0 0.0
        %981 = vmatmul.mubr.f32.gmra.mrb[0].mxu0 %v851
        %v982 = vpop.f32.mrb[0].mxu0
        %v983 = vadd.f32 %v821, %v982
        %v984 = vpop.f32.mrb[0].mxu0
        %985 = vmatprep.mubr.f32.mxu0 0.0
        %986 = vmatmul.mubr.f32.gmra.mrb[0].mxu0 %v854
        %v987 = vpop.f32.mrb[0].mxu0
        %v988 = vadd.f32 %v821, %v987
        %v989 = vpop.f32.mrb[0].mxu0
        %990 = vmatprep.mubr.f32.mxu0 0.0
        %991 = vmatmul.mubr.f32.gmra.mrb[0].mxu0 %v857
        %v992 = vpop.f32.mrb[0].mxu0
        %v993 = vadd.f32 %v821, %v992
        %v994 = vpop.f32.mrb[0].mxu0
        %995 = vmatprep.mubr.f32.mxu0 0.0
        %996 = vmatmul.mubr.f32.gmra.mrb[0].mxu0 %v860
        %v997 = vpop.f32.mrb[0].mxu0
        %v998 = vadd.f32 %v821, %v997
        %v999 = vpop.f32.mrb[0].mxu0
        %1000 = vmatprep.mubr.f32.mxu0 0.0
        %1001 = vmatmul.mubr.f32.gmra.mrb[0].mxu0 %v863
        %v1002 = vpop.f32.mrb[0].mxu0
        %v1003 = vadd.f32 %v821, %v1002
        %v1004 = vpop.f32.mrb[0].mxu0
        %1005 = vmatprep.mubr.f32.mxu0 0.0
        %1006 = vmatmul.mubr.f32.gmra.mrb[0].mxu0 %v866
        %v1007 = vpop.f32.mrb[0].mxu0
        %v1008 = vadd.f32 %v821, %v1007
        %v1009 = vpop.f32.mrb[0].mxu0
        %1010 = vmatprep.mubr.f32.mxu0 0.0
        %1011 = vmatmul.mubr.f32.gmra.mrb[0].mxu0 %v869
        %v1012 = vpop.f32.mrb[0].mxu0
        %v1013 = vadd.f32 %v821, %v1012
        %v1014 = vpop.f32.mrb[0].mxu0
        %1015 = vdwg.mxu0
        %v1016 = vmax.f32 %v938, 0.0
        %v1017 = vmax.f32 %v943, 0.0
        %v1018 = vmax.f32 %v948, 0.0
        %v1019 = vmax.f32 %v953, 0.0
        %v1020 = vmax.f32 %v958, 0.0
        %v1021 = vmax.f32 %v963, 0.0
        %v1022 = vmax.f32 %v968, 0.0
        %v1023 = vmax.f32 %v973, 0.0
        %v1024 = vmax.f32 %v978, 0.0
        %v1025 = vmax.f32 %v983, 0.0
        %v1026 = vmax.f32 %v988, 0.0
        %v1027 = vmax.f32 %v993, 0.0
        %v1028 = vmax.f32 %v998, 0.0
        %v1029 = vmax.f32 %v1003, 0.0
        %v1030 = vmax.f32 %v1008, 0.0
        %v1031 = vmax.f32 %v1013, 0.0
        %v1032 = vsel %vm801, %v1016, -inf
        %v1033 = vsel %vm801, %v1017, -inf
        %v1034 = vmax.f32 %v1032, %v1033
        %v1035 = vrot.slane %v1034, 4
        %v1036 = vmax.f32 %v1034, %v1035
        %v1037 = vrot.slane %v1036, 2
        %v1038 = vmax.f32 %v1036, %v1037
        %v1039 = vrot.slane %v1038, 1
        %v1040 = vmax.f32 %v1038, %v1039
        %v1041 = vsel %vm801, %v1018, -inf
        %v1042 = vsel %vm801, %v1019, -inf
        %v1043 = vmax.f32 %v1041, %v1042
        %v1044 = vrot.slane %v1043, 4
        %v1045 = vmax.f32 %v1043, %v1044
        %v1046 = vrot.slane %v1045, 2
        %v1047 = vmax.f32 %v1045, %v1046
        %v1048 = vrot.slane %v1047, 1
        %v1049 = vmax.f32 %v1047, %v1048
        %v1050 = vsel %vm801, %v1020, -inf
        %v1051 = vsel %vm801, %v1021, -inf
        %v1052 = vmax.f32 %v1050, %v1051
        %v1053 = vrot.slane %v1052, 4
        %v1054 = vmax.f32 %v1052, %v1053
        %v1055 = vrot.slane %v1054, 2
        %v1056 = vmax.f32 %v1054, %v1055
        %v1057 = vrot.slane %v1056, 1
        %v1058 = vmax.f32 %v1056, %v1057
        %v1059 = vsel %vm801, %v1022, -inf
        %v1060 = vsel %vm801, %v1023, -inf
        %v1061 = vmax.f32 %v1059, %v1060
        %v1062 = vrot.slane %v1061, 4
        %v1063 = vmax.f32 %v1061, %v1062
        %v1064 = vrot.slane %v1063, 2
        %v1065 = vmax.f32 %v1063, %v1064
        %v1066 = vrot.slane %v1065, 1
        %v1067 = vmax.f32 %v1065, %v1066
        %v1068 = vsel %vm801, %v1024, -inf
        %v1069 = vsel %vm801, %v1025, -inf
        %v1070 = vmax.f32 %v1068, %v1069
        %v1071 = vrot.slane %v1070, 4
        %v1072 = vmax.f32 %v1070, %v1071
        %v1073 = vrot.slane %v1072, 2
        %v1074 = vmax.f32 %v1072, %v1073
        %v1075 = vrot.slane %v1074, 1
        %v1076 = vmax.f32 %v1074, %v1075
        %v1077 = vsel %vm801, %v1026, -inf
        %v1078 = vsel %vm801, %v1027, -inf
        %v1079 = vmax.f32 %v1077, %v1078
        %v1080 = vrot.slane %v1079, 4
        %v1081 = vmax.f32 %v1079, %v1080
        %v1082 = vrot.slane %v1081, 2
        %v1083 = vmax.f32 %v1081, %v1082
        %v1084 = vrot.slane %v1083, 1
        %v1085 = vmax.f32 %v1083, %v1084
        %v1086 = vsel %vm801, %v1028, -inf
        %v1087 = vsel %vm801, %v1029, -inf
        %v1088 = vmax.f32 %v1086, %v1087
        %v1089 = vrot.slane %v1088, 4
        %v1090 = vmax.f32 %v1088, %v1089
        %v1091 = vrot.slane %v1090, 2
        %v1092 = vmax.f32 %v1090, %v1091
        %v1093 = vrot.slane %v1092, 1
        %v1094 = vmax.f32 %v1092, %v1093
        %v1095 = vsel %vm801, %v1030, -inf
        %v1096 = vsel %vm801, %v1031, -inf
        %v1097 = vmax.f32 %v1095, %v1096
        %v1098 = vrot.slane %v1097, 4
        %v1099 = vmax.f32 %v1097, %v1098
        %v1100 = vrot.slane %v1099, 2
        %v1101 = vmax.f32 %v1099, %v1100
        %v1102 = vrot.slane %v1101, 1
        %v1103 = vmax.f32 %v1101, %v1102
        %v1104 = vld [vmem:[%s2] sm:$0xff]
        %v1105 = vld [vmem:[%s2 + $0x8] sm:$0xff]
        %v1106 = vld [vmem:[%s2 + $0x10] sm:$0xff]
        %v1107 = vld [vmem:[%s2 + $0x18] sm:$0xff]
        %v1108 = vld [vmem:[%s2 + $0x20] sm:$0xff]
        %v1109 = vld [vmem:[%s2 + $0x28] sm:$0xff]
        %v1110 = vld [vmem:[%s2 + $0x30] sm:$0xff]
        %v1111 = vld [vmem:[%s2 + $0x38] sm:$0xff]
        %v1112 = vld [vmem:[%s2 + $0x40] sm:$0xff]
        %v1113 = vld [vmem:[%s2 + $0x48] sm:$0xff]
        %v1114 = vld [vmem:[%s2 + $0x50] sm:$0xff]
        %v1115 = vld [vmem:[%s2 + $0x58] sm:$0xff]
        %v1132 = vrot.slane %v1016, 7
        %v1133 = vrot.slane %v1017, 7
        %v1134 = vsel %vm542, %v1132, %v1133
        %v1135 = vrot.slane %v1018, 7
        %v1136 = vsel %vm542, %v1133, %v1135
        %v1137 = vrot.slane %v1019, 7
        %v1138 = vsel %vm542, %v1135, %v1137
        %v1139 = vrot.slane %v1020, 7
        %v1140 = vsel %vm542, %v1137, %v1139
        %v1141 = vrot.slane %v1021, 7
        %v1142 = vsel %vm542, %v1139, %v1141
        %v1143 = vrot.slane %v1022, 7
        %v1144 = vsel %vm542, %v1141, %v1143
        %v1145 = vrot.slane %v1023, 7
        %v1146 = vsel %vm542, %v1143, %v1145
        %v1147 = vrot.slane %v1024, 7
        %v1148 = vsel %vm542, %v1145, %v1147
        %v1149 = vrot.slane %v1025, 7
        %v1150 = vsel %vm542, %v1147, %v1149
        %v1151 = vrot.slane %v1026, 7
        %v1152 = vsel %vm542, %v1149, %v1151
        %v1153 = vrot.slane %v1027, 7
        %v1154 = vsel %vm542, %v1151, %v1153
        %v1155 = vrot.slane %v1028, 7
        %v1156 = vsel %vm542, %v1153, %v1155
        %v1157 = vrot.slane %v1029, 7
        %v1158 = vsel %vm542, %v1155, %v1157
        %v1159 = vrot.slane %v1030, 7
        %v1160 = vsel %vm542, %v1157, %v1159
        %v1161 = vrot.slane %v1031, 7
        %v1162 = vsel %vm542, %v1159, %v1161
        %v1179 = vsel %vm542, 0.0, %v1132
        %v1180 = vmul.f32 %v1179, %v439
        %v1181 = vmul.f32 %v1134, %v440
        %v1182 = vmul.f32 %v1136, %v441
        %v1183 = vmul.f32 %v1138, %v442
        %v1184 = vmul.f32 %v1140, %v443
        %v1185 = vmul.f32 %v1142, %v444
        %v1186 = vmul.f32 %v1144, %v445
        %v1187 = vmul.f32 %v1146, %v446
        %v1188 = vmul.f32 %v1148, %v447
        %v1189 = vmul.f32 %v1150, %v448
        %v1190 = vmul.f32 %v1152, %v449
        %v1191 = vmul.f32 %v1154, %v450
        %v1192 = vmul.f32 %v1156, %v451
        %v1193 = vmul.f32 %v1158, %v452
        %v1194 = vmul.f32 %v1160, %v453
        %v1195 = vmul.f32 %v1162, %v454
        %v1196 = vrot.slane %v1016, 1
        %v1197 = vrot.slane %v1017, 1
        %v1198 = vsel %vm607, %v1196, %v1197
        %v1199 = vrot.slane %v1018, 1
        %v1200 = vsel %vm607, %v1197, %v1199
        %v1201 = vrot.slane %v1019, 1
        %v1202 = vsel %vm607, %v1199, %v1201
        %v1203 = vrot.slane %v1020, 1
        %v1204 = vsel %vm607, %v1201, %v1203
        %v1205 = vrot.slane %v1021, 1
        %v1206 = vsel %vm607, %v1203, %v1205
        %v1207 = vrot.slane %v1022, 1
        %v1208 = vsel %vm607, %v1205, %v1207
        %v1209 = vrot.slane %v1023, 1
        %v1210 = vsel %vm607, %v1207, %v1209
        %v1211 = vrot.slane %v1024, 1
        %v1212 = vsel %vm607, %v1209, %v1211
        %v1213 = vrot.slane %v1025, 1
        %v1214 = vsel %vm607, %v1211, %v1213
        %v1215 = vrot.slane %v1026, 1
        %v1216 = vsel %vm607, %v1213, %v1215
        %v1217 = vrot.slane %v1027, 1
        %v1218 = vsel %vm607, %v1215, %v1217
        %v1219 = vrot.slane %v1028, 1
        %v1220 = vsel %vm607, %v1217, %v1219
        %v1221 = vrot.slane %v1029, 1
        %v1222 = vsel %vm607, %v1219, %v1221
        %v1223 = vrot.slane %v1030, 1
        %v1224 = vsel %vm607, %v1221, %v1223
        %v1225 = vrot.slane %v1031, 1
        %v1226 = vsel %vm607, %v1223, %v1225
        %v1243 = vsel %vm607, %v1225, 0.0
        %v1244 = vmul.f32 %v1198, %v487
        %v1245 = vmul.f32 %v1200, %v488
        %v1246 = vmul.f32 %v1202, %v489
        %v1247 = vmul.f32 %v1204, %v490
        %v1248 = vmul.f32 %v1206, %v491
        %v1249 = vmul.f32 %v1208, %v492
        %v1250 = vmul.f32 %v1210, %v493
        %v1251 = vmul.f32 %v1212, %v494
        %v1252 = vmul.f32 %v1214, %v495
        %v1253 = vmul.f32 %v1216, %v496
        %v1254 = vmul.f32 %v1218, %v497
        %v1255 = vmul.f32 %v1220, %v498
        %v1256 = vmul.f32 %v1222, %v499
        %v1257 = vmul.f32 %v1224, %v500
        %v1258 = vmul.f32 %v1226, %v501
        %v1259 = vmul.f32 %v1243, %v502
        %1260 = vrot.lane.b32.xlu0 %v1016, 32
        %v1261 = vpop.permute.xlu0 %1260
        %1262 = vrot.lane.b32.xlu0 %v1017, 32
        %v1263 = vpop.permute.xlu0 %1262
        %1264 = vrot.lane.b32.xlu0 %v1018, 32
        %v1265 = vpop.permute.xlu0 %1264
        %1266 = vrot.lane.b32.xlu0 %v1019, 32
        %v1267 = vpop.permute.xlu0 %1266
        %1268 = vrot.lane.b32.xlu0 %v1020, 32
        %v1269 = vpop.permute.xlu0 %1268
        %1270 = vrot.lane.b32.xlu0 %v1021, 32
        %v1271 = vpop.permute.xlu0 %1270
        %1272 = vrot.lane.b32.xlu0 %v1022, 32
        %v1273 = vpop.permute.xlu0 %1272
        %1274 = vrot.lane.b32.xlu0 %v1023, 32
        %v1275 = vpop.permute.xlu0 %1274
        %1276 = vrot.lane.b32.xlu0 %v1024, 32
        %v1277 = vpop.permute.xlu0 %1276
        %1278 = vrot.lane.b32.xlu0 %v1025, 32
        %v1279 = vpop.permute.xlu0 %1278
        %1280 = vrot.lane.b32.xlu0 %v1026, 32
        %v1281 = vpop.permute.xlu0 %1280
        %1282 = vrot.lane.b32.xlu0 %v1027, 32
        %v1283 = vpop.permute.xlu0 %1282
        %1284 = vrot.lane.b32.xlu0 %v1028, 32
        %v1285 = vpop.permute.xlu0 %1284
        %1286 = vrot.lane.b32.xlu0 %v1029, 32
        %v1287 = vpop.permute.xlu0 %1286
        %1288 = vrot.lane.b32.xlu0 %v1030, 32
        %v1289 = vpop.permute.xlu0 %1288
        %1290 = vrot.lane.b32.xlu0 %v1031, 32
        %v1291 = vpop.permute.xlu0 %1290
        %1324 = vrot.lane.b32.xlu0 %v1244, 64
        %v1325 = vpop.permute.xlu0 %1324
        %1326 = vrot.lane.b32.xlu0 %v1245, 64
        %v1327 = vpop.permute.xlu0 %1326
        %1328 = vrot.lane.b32.xlu0 %v1246, 64
        %v1329 = vpop.permute.xlu0 %1328
        %1330 = vrot.lane.b32.xlu0 %v1247, 64
        %v1331 = vpop.permute.xlu0 %1330
        %1332 = vrot.lane.b32.xlu0 %v1248, 64
        %v1333 = vpop.permute.xlu0 %1332
        %1334 = vrot.lane.b32.xlu0 %v1249, 64
        %v1335 = vpop.permute.xlu0 %1334
        %1336 = vrot.lane.b32.xlu0 %v1250, 64
        %v1337 = vpop.permute.xlu0 %1336
        %1338 = vrot.lane.b32.xlu0 %v1251, 64
        %v1339 = vpop.permute.xlu0 %1338
        %1340 = vrot.lane.b32.xlu0 %v1252, 64
        %v1341 = vpop.permute.xlu0 %1340
        %1342 = vrot.lane.b32.xlu0 %v1253, 64
        %v1343 = vpop.permute.xlu0 %1342
        %1344 = vrot.lane.b32.xlu0 %v1254, 64
        %v1345 = vpop.permute.xlu0 %1344
        %1346 = vrot.lane.b32.xlu0 %v1255, 64
        %v1347 = vpop.permute.xlu0 %1346
        %1348 = vrot.lane.b32.xlu0 %v1256, 64
        %v1349 = vpop.permute.xlu0 %1348
        %1350 = vrot.lane.b32.xlu0 %v1257, 64
        %v1351 = vpop.permute.xlu0 %1350
        %1352 = vrot.lane.b32.xlu0 %v1258, 64
        %v1353 = vpop.permute.xlu0 %1352
        %1354 = vrot.lane.b32.xlu0 %v1259, 64
        %v1355 = vpop.permute.xlu0 %1354
        %v1372 = vsel %vm801, %v1180, %v1261
        %v1373 = vsel %vm801, %v1181, %v1263
        %v1374 = vsel %vm801, %v1182, %v1265
        %v1375 = vsel %vm801, %v1183, %v1267
        %v1376 = vsel %vm801, %v1184, %v1269
        %v1377 = vsel %vm801, %v1185, %v1271
        %v1378 = vsel %vm801, %v1186, %v1273
        %v1379 = vsel %vm801, %v1187, %v1275
        %v1380 = vsel %vm801, %v1188, %v1277
        %v1381 = vsel %vm801, %v1189, %v1279
        %v1382 = vsel %vm801, %v1190, %v1281
        %v1383 = vsel %vm801, %v1191, %v1283
        %v1384 = vsel %vm801, %v1192, %v1285
        %v1385 = vsel %vm801, %v1193, %v1287
        %v1386 = vsel %vm801, %v1194, %v1289
        %v1387 = vsel %vm801, %v1195, %v1291
        %vm1388 = vcmask 523264
        %v1389 = vsel %vm1388, %v1372, %v1325
        %v1390 = vsel %vm1388, %v1373, %v1327
        %v1391 = vsel %vm1388, %v1374, %v1329
        %v1392 = vsel %vm1388, %v1375, %v1331
        %v1393 = vsel %vm1388, %v1376, %v1333
        %v1394 = vsel %vm1388, %v1377, %v1335
        %v1395 = vsel %vm1388, %v1378, %v1337
        %v1396 = vsel %vm1388, %v1379, %v1339
        %v1397 = vsel %vm1388, %v1380, %v1341
        %v1398 = vsel %vm1388, %v1381, %v1343
        %v1399 = vsel %vm1388, %v1382, %v1345
        %v1400 = vsel %vm1388, %v1383, %v1347
        %v1401 = vsel %vm1388, %v1384, %v1349
        %v1402 = vsel %vm1388, %v1385, %v1351
        %v1403 = vsel %vm1388, %v1386, %v1353
        %v1404 = vsel %vm1388, %v1387, %v1355
        %v1405 = vlaneseq
        %v1406 = vshrl.u32 %v1405, 7
        %v1407 = vsub.s32 1, %v1406
        %v1408 = vrot.slane %v503, %v1407
        %vm1409 = vcmask 785408
        %v1411 = vsel %vm1409, %v1389, 0
        %v1414 = vsel %vm1409, %v1390, 0
        %v1417 = vsel %vm1409, %v1391, 0
        %v1420 = vsel %vm1409, %v1392, 0
        %v1423 = vsel %vm1409, %v1393, 0
        %v1426 = vsel %vm1409, %v1394, 0
        %v1429 = vsel %vm1409, %v1395, 0
        %v1432 = vsel %vm1409, %v1396, 0
        %v1435 = vsel %vm1409, %v1397, 0
        %v1438 = vsel %vm1409, %v1398, 0
        %v1441 = vsel %vm1409, %v1399, 0
        %v1444 = vsel %vm1409, %v1400, 0
        %v1447 = vsel %vm1409, %v1401, 0
        %v1450 = vsel %vm1409, %v1402, 0
        %v1453 = vsel %vm1409, %v1403, 0
        %v1456 = vsel %vm1409, %v1404, 0
        %1458 = vmatprep.subr.mxu0 0.0
        %1459 = vmatpush1.msra.mxu0 %v1104
        %1460 = vmatprep.subr.mxu0 0.0
        %1461 = vmatpush1.msra.mxu0 %v1105
        %1462 = vmatprep.subr.mxu0 0.0
        %1463 = vmatpush1.msra.mxu0 %v1106
        %1464 = vmatprep.subr.mxu0 0.0
        %1465 = vmatpush1.msra.mxu0 %v1107
        %1466 = vmatprep.subr.mxu0 0.0
        %1467 = vmatpush1.msra.mxu0 %v1108
        %1468 = vmatprep.subr.mxu0 0.0
        %1469 = vmatpush1.msra.mxu0 %v1109
        %1470 = vmatprep.subr.mxu0 0.0
        %1471 = vmatpush1.msra.mxu0 %v1110
        %1472 = vmatprep.subr.mxu0 0.0
        %1473 = vmatpush1.msra.mxu0 %v1111
        %1474 = vmatprep.subr.mxu0 0.0
        %1475 = vmatpush1.msra.mxu0 %v1112
        %1476 = vmatprep.subr.mxu0 0.0
        %1477 = vmatpush1.msra.mxu0 %v1113
        %1478 = vmatprep.subr.mxu0 0.0
        %1479 = vmatpush1.msra.mxu0 %v1114
        %1480 = vmatprep.subr.mxu0 0.0
        %1481 = vmatpush1.msra.mxu0 %v1115
        %1482 = vmatprep.subr.mxu0 0.0
        %1483 = vmatpush1.msra.mxu0 0.0
        %1484 = vmatprep.subr.mxu0 0.0
        %1485 = vmatpush1.msra.mxu0 0.0
        %1486 = vmatprep.subr.mxu0 0.0
        %1487 = vmatpush1.msra.mxu0 0.0
        %1488 = vmatprep.subr.mxu0 0.0
        %1489 = vmatpush1.msra.mxu0 0.0
        %1490 = vmatprep.subr.mxu0 0.0
        %1491 = vmatpush1.msra.mxu0 0.0
        %1492 = vmatprep.subr.mxu0 0.0
        %1493 = vmatpush1.msra.mxu0 0.0
        %1494 = vmatprep.subr.mxu0 0.0
        %1495 = vmatpush1.msra.mxu0 0.0
        %1496 = vmatprep.subr.mxu0 0.0
        %1497 = vmatpush1.msra.mxu0 0.0
        %1498 = vmatprep.subr.mxu0 0.0
        %1499 = vmatpush1.msra.mxu0 0.0
        %1500 = vmatprep.subr.mxu0 0.0
        %1501 = vmatpush1.msra.mxu0 0.0
        %1502 = vmatprep.subr.mxu0 0.0
        %1503 = vmatpush1.msra.mxu0 0.0
        %1504 = vmatprep.subr.mxu0 0.0
        %1505 = vmatpush1.msra.mxu0 0.0
        %1506 = vmatprep.subr.mxu0 0.0
        %1507 = vmatpush1.msra.mxu0 0.0
        %1508 = vmatprep.subr.mxu0 0.0
        %1509 = vmatpush1.msra.mxu0 0.0
        %1510 = vmatprep.subr.mxu0 0.0
        %1511 = vmatpush1.msra.mxu0 0.0
        %1512 = vmatprep.subr.mxu0 0.0
        %1513 = vmatpush1.msra.mxu0 0.0
        %1514 = vmatprep.subr.mxu0 0.0
        %1515 = vmatpush1.msra.mxu0 0.0
        %1516 = vmatprep.subr.mxu0 0.0
        %1517 = vmatpush1.msra.mxu0 0.0
        %1518 = vmatprep.subr.mxu0 0.0
        %1519 = vmatpush1.msra.mxu0 0.0
        %1520 = vmatprep.subr.mxu0 0.0
        %1521 = vmatpush1.msra.mxu0 0.0
        %1522 = vmatprep.mubr.f32.mxu0 0.0
        %1523 = vmatmul.mubr.f32.gmra.mrb[0].mxu0 %v1411
        %v1524 = vpop.f32.mrb[0].mxu0
        %v1525 = vadd.f32 %v1408, %v1524
        %v1526 = vpop.f32.mrb[0].mxu0
        %1527 = vmatprep.mubr.f32.mxu0 0.0
        %1528 = vmatmul.mubr.f32.gmra.mrb[0].mxu0 %v1414
        %v1529 = vpop.f32.mrb[0].mxu0
        %v1530 = vadd.f32 %v1408, %v1529
        %v1531 = vpop.f32.mrb[0].mxu0
        %1532 = vmatprep.mubr.f32.mxu0 0.0
        %1533 = vmatmul.mubr.f32.gmra.mrb[0].mxu0 %v1417
        %v1534 = vpop.f32.mrb[0].mxu0
        %v1535 = vadd.f32 %v1408, %v1534
        %v1536 = vpop.f32.mrb[0].mxu0
        %1537 = vmatprep.mubr.f32.mxu0 0.0
        %1538 = vmatmul.mubr.f32.gmra.mrb[0].mxu0 %v1420
        %v1539 = vpop.f32.mrb[0].mxu0
        %v1540 = vadd.f32 %v1408, %v1539
        %v1541 = vpop.f32.mrb[0].mxu0
        %1542 = vmatprep.mubr.f32.mxu0 0.0
        %1543 = vmatmul.mubr.f32.gmra.mrb[0].mxu0 %v1423
        %v1544 = vpop.f32.mrb[0].mxu0
        %v1545 = vadd.f32 %v1408, %v1544
        %v1546 = vpop.f32.mrb[0].mxu0
        %1547 = vmatprep.mubr.f32.mxu0 0.0
        %1548 = vmatmul.mubr.f32.gmra.mrb[0].mxu0 %v1426
        %v1549 = vpop.f32.mrb[0].mxu0
        %v1550 = vadd.f32 %v1408, %v1549
        %v1551 = vpop.f32.mrb[0].mxu0
        %1552 = vmatprep.mubr.f32.mxu0 0.0
        %1553 = vmatmul.mubr.f32.gmra.mrb[0].mxu0 %v1429
        %v1554 = vpop.f32.mrb[0].mxu0
        %v1555 = vadd.f32 %v1408, %v1554
        %v1556 = vpop.f32.mrb[0].mxu0
        %1557 = vmatprep.mubr.f32.mxu0 0.0
        %1558 = vmatmul.mubr.f32.gmra.mrb[0].mxu0 %v1432
        %v1559 = vpop.f32.mrb[0].mxu0
        %v1560 = vadd.f32 %v1408, %v1559
        %v1561 = vpop.f32.mrb[0].mxu0
        %1562 = vmatprep.mubr.f32.mxu0 0.0
        %1563 = vmatmul.mubr.f32.gmra.mrb[0].mxu0 %v1435
        %v1564 = vpop.f32.mrb[0].mxu0
        %v1565 = vadd.f32 %v1408, %v1564
        %v1566 = vpop.f32.mrb[0].mxu0
        %1567 = vmatprep.mubr.f32.mxu0 0.0
        %1568 = vmatmul.mubr.f32.gmra.mrb[0].mxu0 %v1438
        %v1569 = vpop.f32.mrb[0].mxu0
        %v1570 = vadd.f32 %v1408, %v1569
        %v1571 = vpop.f32.mrb[0].mxu0
        %1572 = vmatprep.mubr.f32.mxu0 0.0
        %1573 = vmatmul.mubr.f32.gmra.mrb[0].mxu0 %v1441
        %v1574 = vpop.f32.mrb[0].mxu0
        %v1575 = vadd.f32 %v1408, %v1574
        %v1576 = vpop.f32.mrb[0].mxu0
        %1577 = vmatprep.mubr.f32.mxu0 0.0
        %1578 = vmatmul.mubr.f32.gmra.mrb[0].mxu0 %v1444
        %v1579 = vpop.f32.mrb[0].mxu0
        %v1580 = vadd.f32 %v1408, %v1579
        %v1581 = vpop.f32.mrb[0].mxu0
        %1582 = vmatprep.mubr.f32.mxu0 0.0
        %1583 = vmatmul.mubr.f32.gmra.mrb[0].mxu0 %v1447
        %v1584 = vpop.f32.mrb[0].mxu0
        %v1585 = vadd.f32 %v1408, %v1584
        %v1586 = vpop.f32.mrb[0].mxu0
        %1587 = vmatprep.mubr.f32.mxu0 0.0
        %1588 = vmatmul.mubr.f32.gmra.mrb[0].mxu0 %v1450
        %v1589 = vpop.f32.mrb[0].mxu0
        %v1590 = vadd.f32 %v1408, %v1589
        %v1591 = vpop.f32.mrb[0].mxu0
        %1592 = vmatprep.mubr.f32.mxu0 0.0
        %1593 = vmatmul.mubr.f32.gmra.mrb[0].mxu0 %v1453
        %v1594 = vpop.f32.mrb[0].mxu0
        %v1595 = vadd.f32 %v1408, %v1594
        %v1596 = vpop.f32.mrb[0].mxu0
        %1597 = vmatprep.mubr.f32.mxu0 0.0
        %1598 = vmatmul.mubr.f32.gmra.mrb[0].mxu0 %v1456
        %v1599 = vpop.f32.mrb[0].mxu0
        %v1600 = vadd.f32 %v1408, %v1599
        %v1601 = vpop.f32.mrb[0].mxu0
        %1602 = vdwg.mxu0
        %v1603 = vmax.f32 %v1525, 0.0
        %v1604 = vmax.f32 %v1530, 0.0
        %v1605 = vmax.f32 %v1535, 0.0
        %v1606 = vmax.f32 %v1540, 0.0
        %v1607 = vmax.f32 %v1545, 0.0
        %v1608 = vmax.f32 %v1550, 0.0
        %v1609 = vmax.f32 %v1555, 0.0
        %v1610 = vmax.f32 %v1560, 0.0
        %v1611 = vmax.f32 %v1565, 0.0
        %v1612 = vmax.f32 %v1570, 0.0
        %v1613 = vmax.f32 %v1575, 0.0
        %v1614 = vmax.f32 %v1580, 0.0
        %v1615 = vmax.f32 %v1585, 0.0
        %v1616 = vmax.f32 %v1590, 0.0
        %v1617 = vmax.f32 %v1595, 0.0
        %v1618 = vmax.f32 %v1600, 0.0
        %v1619 = vsel %vm801, %v1603, -inf
        %v1620 = vsel %vm801, %v1604, -inf
        %v1621 = vmax.f32 %v1619, %v1620
        %v1622 = vrot.slane %v1621, 4
        %v1623 = vmax.f32 %v1621, %v1622
        %v1624 = vrot.slane %v1623, 2
        %v1625 = vmax.f32 %v1623, %v1624
        %v1626 = vrot.slane %v1625, 1
        %v1627 = vmax.f32 %v1625, %v1626
        %v1628 = vsel %vm801, %v1605, -inf
        %v1629 = vsel %vm801, %v1606, -inf
        %v1630 = vmax.f32 %v1628, %v1629
        %v1631 = vrot.slane %v1630, 4
        %v1632 = vmax.f32 %v1630, %v1631
        %v1633 = vrot.slane %v1632, 2
        %v1634 = vmax.f32 %v1632, %v1633
        %v1635 = vrot.slane %v1634, 1
        %v1636 = vmax.f32 %v1634, %v1635
        %v1637 = vsel %vm801, %v1607, -inf
        %v1638 = vsel %vm801, %v1608, -inf
        %v1639 = vmax.f32 %v1637, %v1638
        %v1640 = vrot.slane %v1639, 4
        %v1641 = vmax.f32 %v1639, %v1640
        %v1642 = vrot.slane %v1641, 2
        %v1643 = vmax.f32 %v1641, %v1642
        %v1644 = vrot.slane %v1643, 1
        %v1645 = vmax.f32 %v1643, %v1644
        %v1646 = vsel %vm801, %v1609, -inf
        %v1647 = vsel %vm801, %v1610, -inf
        %v1648 = vmax.f32 %v1646, %v1647
        %v1649 = vrot.slane %v1648, 4
        %v1650 = vmax.f32 %v1648, %v1649
        %v1651 = vrot.slane %v1650, 2
        %v1652 = vmax.f32 %v1650, %v1651
        %v1653 = vrot.slane %v1652, 1
        %v1654 = vmax.f32 %v1652, %v1653
        %v1655 = vsel %vm801, %v1611, -inf
        %v1656 = vsel %vm801, %v1612, -inf
        %v1657 = vmax.f32 %v1655, %v1656
        %v1658 = vrot.slane %v1657, 4
        %v1659 = vmax.f32 %v1657, %v1658
        %v1660 = vrot.slane %v1659, 2
        %v1661 = vmax.f32 %v1659, %v1660
        %v1662 = vrot.slane %v1661, 1
        %v1663 = vmax.f32 %v1661, %v1662
        %v1664 = vsel %vm801, %v1613, -inf
        %v1665 = vsel %vm801, %v1614, -inf
        %v1666 = vmax.f32 %v1664, %v1665
        %v1667 = vrot.slane %v1666, 4
        %v1668 = vmax.f32 %v1666, %v1667
        %v1669 = vrot.slane %v1668, 2
        %v1670 = vmax.f32 %v1668, %v1669
        %v1671 = vrot.slane %v1670, 1
        %v1672 = vmax.f32 %v1670, %v1671
        %v1673 = vsel %vm801, %v1615, -inf
        %v1674 = vsel %vm801, %v1616, -inf
        %v1675 = vmax.f32 %v1673, %v1674
        %v1676 = vrot.slane %v1675, 4
        %v1677 = vmax.f32 %v1675, %v1676
        %v1678 = vrot.slane %v1677, 2
        %v1679 = vmax.f32 %v1677, %v1678
        %v1680 = vrot.slane %v1679, 1
        %v1681 = vmax.f32 %v1679, %v1680
        %v1682 = vsel %vm801, %v1617, -inf
        %v1683 = vsel %vm801, %v1618, -inf
        %v1684 = vmax.f32 %v1682, %v1683
        %v1685 = vrot.slane %v1684, 4
        %v1686 = vmax.f32 %v1684, %v1685
        %v1687 = vrot.slane %v1686, 2
        %v1688 = vmax.f32 %v1686, %v1687
        %v1689 = vrot.slane %v1688, 1
        %v1690 = vmax.f32 %v1688, %v1689
        %s1691 = scalar_lea.vmem %s2, 96
        %v1692 = vld [vmem:[%s1691] sm:$0xff]
        %v1693 = vld [vmem:[%s1691 + $0x8] sm:$0xff]
        %v1694 = vld [vmem:[%s1691 + $0x10] sm:$0xff]
        %v1695 = vld [vmem:[%s1691 + $0x18] sm:$0xff]
        %v1696 = vld [vmem:[%s1691 + $0x20] sm:$0xff]
        %v1697 = vld [vmem:[%s1691 + $0x28] sm:$0xff]
        %v1698 = vld [vmem:[%s1691 + $0x30] sm:$0xff]
        %v1699 = vld [vmem:[%s1691 + $0x38] sm:$0xff]
        %v1700 = vld [vmem:[%s1691 + $0x40] sm:$0xff]
        %v1701 = vld [vmem:[%s1691 + $0x48] sm:$0xff]
        %v1702 = vld [vmem:[%s1691 + $0x50] sm:$0xff]
        %v1703 = vld [vmem:[%s1691 + $0x58] sm:$0xff]
        %v1720 = vrot.slane %v1603, 7
        %v1721 = vrot.slane %v1604, 7
        %v1722 = vsel %vm542, %v1720, %v1721
        %v1723 = vrot.slane %v1605, 7
        %v1724 = vsel %vm542, %v1721, %v1723
        %v1725 = vrot.slane %v1606, 7
        %v1726 = vsel %vm542, %v1723, %v1725
        %v1727 = vrot.slane %v1607, 7
        %v1728 = vsel %vm542, %v1725, %v1727
        %v1729 = vrot.slane %v1608, 7
        %v1730 = vsel %vm542, %v1727, %v1729
        %v1731 = vrot.slane %v1609, 7
        %v1732 = vsel %vm542, %v1729, %v1731
        %v1733 = vrot.slane %v1610, 7
        %v1734 = vsel %vm542, %v1731, %v1733
        %v1735 = vrot.slane %v1611, 7
        %v1736 = vsel %vm542, %v1733, %v1735
        %v1737 = vrot.slane %v1612, 7
        %v1738 = vsel %vm542, %v1735, %v1737
        %v1739 = vrot.slane %v1613, 7
        %v1740 = vsel %vm542, %v1737, %v1739
        %v1741 = vrot.slane %v1614, 7
        %v1742 = vsel %vm542, %v1739, %v1741
        %v1743 = vrot.slane %v1615, 7
        %v1744 = vsel %vm542, %v1741, %v1743
        %v1745 = vrot.slane %v1616, 7
        %v1746 = vsel %vm542, %v1743, %v1745
        %v1747 = vrot.slane %v1617, 7
        %v1748 = vsel %vm542, %v1745, %v1747
        %v1749 = vrot.slane %v1618, 7
        %v1750 = vsel %vm542, %v1747, %v1749
        %v1767 = vsel %vm542, 0.0, %v1720
        %v1768 = vmul.f32 %v1767, %v439
        %v1769 = vmul.f32 %v1722, %v440
        %v1770 = vmul.f32 %v1724, %v441
        %v1771 = vmul.f32 %v1726, %v442
        %v1772 = vmul.f32 %v1728, %v443
        %v1773 = vmul.f32 %v1730, %v444
        %v1774 = vmul.f32 %v1732, %v445
        %v1775 = vmul.f32 %v1734, %v446
        %v1776 = vmul.f32 %v1736, %v447
        %v1777 = vmul.f32 %v1738, %v448
        %v1778 = vmul.f32 %v1740, %v449
        %v1779 = vmul.f32 %v1742, %v450
        %v1780 = vmul.f32 %v1744, %v451
        %v1781 = vmul.f32 %v1746, %v452
        %v1782 = vmul.f32 %v1748, %v453
        %v1783 = vmul.f32 %v1750, %v454
        %v1784 = vrot.slane %v1603, 1
        %v1785 = vrot.slane %v1604, 1
        %v1786 = vsel %vm607, %v1784, %v1785
        %v1787 = vrot.slane %v1605, 1
        %v1788 = vsel %vm607, %v1785, %v1787
        %v1789 = vrot.slane %v1606, 1
        %v1790 = vsel %vm607, %v1787, %v1789
        %v1791 = vrot.slane %v1607, 1
        %v1792 = vsel %vm607, %v1789, %v1791
        %v1793 = vrot.slane %v1608, 1
        %v1794 = vsel %vm607, %v1791, %v1793
        %v1795 = vrot.slane %v1609, 1
        %v1796 = vsel %vm607, %v1793, %v1795
        %v1797 = vrot.slane %v1610, 1
        %v1798 = vsel %vm607, %v1795, %v1797
        %v1799 = vrot.slane %v1611, 1
        %v1800 = vsel %vm607, %v1797, %v1799
        %v1801 = vrot.slane %v1612, 1
        %v1802 = vsel %vm607, %v1799, %v1801
        %v1803 = vrot.slane %v1613, 1
        %v1804 = vsel %vm607, %v1801, %v1803
        %v1805 = vrot.slane %v1614, 1
        %v1806 = vsel %vm607, %v1803, %v1805
        %v1807 = vrot.slane %v1615, 1
        %v1808 = vsel %vm607, %v1805, %v1807
        %v1809 = vrot.slane %v1616, 1
        %v1810 = vsel %vm607, %v1807, %v1809
        %v1811 = vrot.slane %v1617, 1
        %v1812 = vsel %vm607, %v1809, %v1811
        %v1813 = vrot.slane %v1618, 1
        %v1814 = vsel %vm607, %v1811, %v1813
        %v1831 = vsel %vm607, %v1813, 0.0
        %v1832 = vmul.f32 %v1786, %v487
        %v1833 = vmul.f32 %v1788, %v488
        %v1834 = vmul.f32 %v1790, %v489
        %v1835 = vmul.f32 %v1792, %v490
        %v1836 = vmul.f32 %v1794, %v491
        %v1837 = vmul.f32 %v1796, %v492
        %v1838 = vmul.f32 %v1798, %v493
        %v1839 = vmul.f32 %v1800, %v494
        %v1840 = vmul.f32 %v1802, %v495
        %v1841 = vmul.f32 %v1804, %v496
        %v1842 = vmul.f32 %v1806, %v497
        %v1843 = vmul.f32 %v1808, %v498
        %v1844 = vmul.f32 %v1810, %v499
        %v1845 = vmul.f32 %v1812, %v500
        %v1846 = vmul.f32 %v1814, %v501
        %v1847 = vmul.f32 %v1831, %v502
        %1848 = vrot.lane.b32.xlu0 %v1603, 32
        %v1849 = vpop.permute.xlu0 %1848
        %1850 = vrot.lane.b32.xlu0 %v1604, 32
        %v1851 = vpop.permute.xlu0 %1850
        %1852 = vrot.lane.b32.xlu0 %v1605, 32
        %v1853 = vpop.permute.xlu0 %1852
        %1854 = vrot.lane.b32.xlu0 %v1606, 32
        %v1855 = vpop.permute.xlu0 %1854
        %1856 = vrot.lane.b32.xlu0 %v1607, 32
        %v1857 = vpop.permute.xlu0 %1856
        %1858 = vrot.lane.b32.xlu0 %v1608, 32
        %v1859 = vpop.permute.xlu0 %1858
        %1860 = vrot.lane.b32.xlu0 %v1609, 32
        %v1861 = vpop.permute.xlu0 %1860
        %1862 = vrot.lane.b32.xlu0 %v1610, 32
        %v1863 = vpop.permute.xlu0 %1862
        %1864 = vrot.lane.b32.xlu0 %v1611, 32
        %v1865 = vpop.permute.xlu0 %1864
        %1866 = vrot.lane.b32.xlu0 %v1612, 32
        %v1867 = vpop.permute.xlu0 %1866
        %1868 = vrot.lane.b32.xlu0 %v1613, 32
        %v1869 = vpop.permute.xlu0 %1868
        %1870 = vrot.lane.b32.xlu0 %v1614, 32
        %v1871 = vpop.permute.xlu0 %1870
        %1872 = vrot.lane.b32.xlu0 %v1615, 32
        %v1873 = vpop.permute.xlu0 %1872
        %1874 = vrot.lane.b32.xlu0 %v1616, 32
        %v1875 = vpop.permute.xlu0 %1874
        %1876 = vrot.lane.b32.xlu0 %v1617, 32
        %v1877 = vpop.permute.xlu0 %1876
        %1878 = vrot.lane.b32.xlu0 %v1618, 32
        %v1879 = vpop.permute.xlu0 %1878
        %1912 = vrot.lane.b32.xlu0 %v1832, 64
        %v1913 = vpop.permute.xlu0 %1912
        %1914 = vrot.lane.b32.xlu0 %v1833, 64
        %v1915 = vpop.permute.xlu0 %1914
        %1916 = vrot.lane.b32.xlu0 %v1834, 64
        %v1917 = vpop.permute.xlu0 %1916
        %1918 = vrot.lane.b32.xlu0 %v1835, 64
        %v1919 = vpop.permute.xlu0 %1918
        %1920 = vrot.lane.b32.xlu0 %v1836, 64
        %v1921 = vpop.permute.xlu0 %1920
        %1922 = vrot.lane.b32.xlu0 %v1837, 64
        %v1923 = vpop.permute.xlu0 %1922
        %1924 = vrot.lane.b32.xlu0 %v1838, 64
        %v1925 = vpop.permute.xlu0 %1924
        %1926 = vrot.lane.b32.xlu0 %v1839, 64
        %v1927 = vpop.permute.xlu0 %1926
        %1928 = vrot.lane.b32.xlu0 %v1840, 64
        %v1929 = vpop.permute.xlu0 %1928
        %1930 = vrot.lane.b32.xlu0 %v1841, 64
        %v1931 = vpop.permute.xlu0 %1930
        %1932 = vrot.lane.b32.xlu0 %v1842, 64
        %v1933 = vpop.permute.xlu0 %1932
        %1934 = vrot.lane.b32.xlu0 %v1843, 64
        %v1935 = vpop.permute.xlu0 %1934
        %1936 = vrot.lane.b32.xlu0 %v1844, 64
        %v1937 = vpop.permute.xlu0 %1936
        %1938 = vrot.lane.b32.xlu0 %v1845, 64
        %v1939 = vpop.permute.xlu0 %1938
        %1940 = vrot.lane.b32.xlu0 %v1846, 64
        %v1941 = vpop.permute.xlu0 %1940
        %1942 = vrot.lane.b32.xlu0 %v1847, 64
        %v1943 = vpop.permute.xlu0 %1942
        %v1960 = vsel %vm801, %v1768, %v1849
        %v1961 = vsel %vm801, %v1769, %v1851
        %v1962 = vsel %vm801, %v1770, %v1853
        %v1963 = vsel %vm801, %v1771, %v1855
        %v1964 = vsel %vm801, %v1772, %v1857
        %v1965 = vsel %vm801, %v1773, %v1859
        %v1966 = vsel %vm801, %v1774, %v1861
        %v1967 = vsel %vm801, %v1775, %v1863
        %v1968 = vsel %vm801, %v1776, %v1865
        %v1969 = vsel %vm801, %v1777, %v1867
        %v1970 = vsel %vm801, %v1778, %v1869
        %v1971 = vsel %vm801, %v1779, %v1871
        %v1972 = vsel %vm801, %v1780, %v1873
        %v1973 = vsel %vm801, %v1781, %v1875
        %v1974 = vsel %vm801, %v1782, %v1877
        %v1975 = vsel %vm801, %v1783, %v1879
        %v1976 = vsel %vm1388, %v1960, %v1913
        %v1977 = vsel %vm1388, %v1961, %v1915
        %v1978 = vsel %vm1388, %v1962, %v1917
        %v1979 = vsel %vm1388, %v1963, %v1919
        %v1980 = vsel %vm1388, %v1964, %v1921
        %v1981 = vsel %vm1388, %v1965, %v1923
        %v1982 = vsel %vm1388, %v1966, %v1925
        %v1983 = vsel %vm1388, %v1967, %v1927
        %v1984 = vsel %vm1388, %v1968, %v1929
        %v1985 = vsel %vm1388, %v1969, %v1931
        %v1986 = vsel %vm1388, %v1970, %v1933
        %v1987 = vsel %vm1388, %v1971, %v1935
        %v1988 = vsel %vm1388, %v1972, %v1937
        %v1989 = vsel %vm1388, %v1973, %v1939
        %v1990 = vsel %vm1388, %v1974, %v1941
        %v1991 = vsel %vm1388, %v1975, %v1943
        %v1992 = vlaneseq
        %v1993 = vshrl.u32 %v1992, 7
        %v1994 = vsub.s32 2, %v1993
        %v1995 = vrot.slane %v503, %v1994
        %v1997 = vsel %vm1409, %v1976, 0
        %v2000 = vsel %vm1409, %v1977, 0
        %v2003 = vsel %vm1409, %v1978, 0
        %v2006 = vsel %vm1409, %v1979, 0
        %v2009 = vsel %vm1409, %v1980, 0
        %v2012 = vsel %vm1409, %v1981, 0
        %v2015 = vsel %vm1409, %v1982, 0
        %v2018 = vsel %vm1409, %v1983, 0
        %v2021 = vsel %vm1409, %v1984, 0
        %v2024 = vsel %vm1409, %v1985, 0
        %v2027 = vsel %vm1409, %v1986, 0
        %v2030 = vsel %vm1409, %v1987, 0
        %v2033 = vsel %vm1409, %v1988, 0
        %v2036 = vsel %vm1409, %v1989, 0
        %v2039 = vsel %vm1409, %v1990, 0
        %v2042 = vsel %vm1409, %v1991, 0
        %2044 = vmatprep.subr.mxu0 0.0
        %2045 = vmatpush1.msra.mxu0 %v1692
        %2046 = vmatprep.subr.mxu0 0.0
        %2047 = vmatpush1.msra.mxu0 %v1693
        %2048 = vmatprep.subr.mxu0 0.0
        %2049 = vmatpush1.msra.mxu0 %v1694
        %2050 = vmatprep.subr.mxu0 0.0
        %2051 = vmatpush1.msra.mxu0 %v1695
        %2052 = vmatprep.subr.mxu0 0.0
        %2053 = vmatpush1.msra.mxu0 %v1696
        %2054 = vmatprep.subr.mxu0 0.0
        %2055 = vmatpush1.msra.mxu0 %v1697
        %2056 = vmatprep.subr.mxu0 0.0
        %2057 = vmatpush1.msra.mxu0 %v1698
        %2058 = vmatprep.subr.mxu0 0.0
        %2059 = vmatpush1.msra.mxu0 %v1699
        %2060 = vmatprep.subr.mxu0 0.0
        %2061 = vmatpush1.msra.mxu0 %v1700
        %2062 = vmatprep.subr.mxu0 0.0
        %2063 = vmatpush1.msra.mxu0 %v1701
        %2064 = vmatprep.subr.mxu0 0.0
        %2065 = vmatpush1.msra.mxu0 %v1702
        %2066 = vmatprep.subr.mxu0 0.0
        %2067 = vmatpush1.msra.mxu0 %v1703
        %2068 = vmatprep.subr.mxu0 0.0
        %2069 = vmatpush1.msra.mxu0 0.0
        %2070 = vmatprep.subr.mxu0 0.0
        %2071 = vmatpush1.msra.mxu0 0.0
        %2072 = vmatprep.subr.mxu0 0.0
        %2073 = vmatpush1.msra.mxu0 0.0
        %2074 = vmatprep.subr.mxu0 0.0
        %2075 = vmatpush1.msra.mxu0 0.0
        %2076 = vmatprep.subr.mxu0 0.0
        %2077 = vmatpush1.msra.mxu0 0.0
        %2078 = vmatprep.subr.mxu0 0.0
        %2079 = vmatpush1.msra.mxu0 0.0
        %2080 = vmatprep.subr.mxu0 0.0
        %2081 = vmatpush1.msra.mxu0 0.0
        %2082 = vmatprep.subr.mxu0 0.0
        %2083 = vmatpush1.msra.mxu0 0.0
        %2084 = vmatprep.subr.mxu0 0.0
        %2085 = vmatpush1.msra.mxu0 0.0
        %2086 = vmatprep.subr.mxu0 0.0
        %2087 = vmatpush1.msra.mxu0 0.0
        %2088 = vmatprep.subr.mxu0 0.0
        %2089 = vmatpush1.msra.mxu0 0.0
        %2090 = vmatprep.subr.mxu0 0.0
        %2091 = vmatpush1.msra.mxu0 0.0
        %2092 = vmatprep.subr.mxu0 0.0
        %2093 = vmatpush1.msra.mxu0 0.0
        %2094 = vmatprep.subr.mxu0 0.0
        %2095 = vmatpush1.msra.mxu0 0.0
        %2096 = vmatprep.subr.mxu0 0.0
        %2097 = vmatpush1.msra.mxu0 0.0
        %2098 = vmatprep.subr.mxu0 0.0
        %2099 = vmatpush1.msra.mxu0 0.0
        %2100 = vmatprep.subr.mxu0 0.0
        %2101 = vmatpush1.msra.mxu0 0.0
        %2102 = vmatprep.subr.mxu0 0.0
        %2103 = vmatpush1.msra.mxu0 0.0
        %2104 = vmatprep.subr.mxu0 0.0
        %2105 = vmatpush1.msra.mxu0 0.0
        %2106 = vmatprep.subr.mxu0 0.0
        %2107 = vmatpush1.msra.mxu0 0.0
        %2108 = vmatprep.mubr.f32.mxu0 0.0
        %2109 = vmatmul.mubr.f32.gmra.mrb[0].mxu0 %v1997
        %v2110 = vpop.f32.mrb[0].mxu0
        %v2111 = vadd.f32 %v1995, %v2110
        %v2112 = vpop.f32.mrb[0].mxu0
        %2113 = vmatprep.mubr.f32.mxu0 0.0
        %2114 = vmatmul.mubr.f32.gmra.mrb[0].mxu0 %v2000
        %v2115 = vpop.f32.mrb[0].mxu0
        %v2116 = vadd.f32 %v1995, %v2115
        %v2117 = vpop.f32.mrb[0].mxu0
        %2118 = vmatprep.mubr.f32.mxu0 0.0
        %2119 = vmatmul.mubr.f32.gmra.mrb[0].mxu0 %v2003
        %v2120 = vpop.f32.mrb[0].mxu0
        %v2121 = vadd.f32 %v1995, %v2120
        %v2122 = vpop.f32.mrb[0].mxu0
        %2123 = vmatprep.mubr.f32.mxu0 0.0
        %2124 = vmatmul.mubr.f32.gmra.mrb[0].mxu0 %v2006
        %v2125 = vpop.f32.mrb[0].mxu0
        %v2126 = vadd.f32 %v1995, %v2125
        %v2127 = vpop.f32.mrb[0].mxu0
        %2128 = vmatprep.mubr.f32.mxu0 0.0
        %2129 = vmatmul.mubr.f32.gmra.mrb[0].mxu0 %v2009
        %v2130 = vpop.f32.mrb[0].mxu0
        %v2131 = vadd.f32 %v1995, %v2130
        %v2132 = vpop.f32.mrb[0].mxu0
        %2133 = vmatprep.mubr.f32.mxu0 0.0
        %2134 = vmatmul.mubr.f32.gmra.mrb[0].mxu0 %v2012
        %v2135 = vpop.f32.mrb[0].mxu0
        %v2136 = vadd.f32 %v1995, %v2135
        %v2137 = vpop.f32.mrb[0].mxu0
        %2138 = vmatprep.mubr.f32.mxu0 0.0
        %2139 = vmatmul.mubr.f32.gmra.mrb[0].mxu0 %v2015
        %v2140 = vpop.f32.mrb[0].mxu0
        %v2141 = vadd.f32 %v1995, %v2140
        %v2142 = vpop.f32.mrb[0].mxu0
        %2143 = vmatprep.mubr.f32.mxu0 0.0
        %2144 = vmatmul.mubr.f32.gmra.mrb[0].mxu0 %v2018
        %v2145 = vpop.f32.mrb[0].mxu0
        %v2146 = vadd.f32 %v1995, %v2145
        %v2147 = vpop.f32.mrb[0].mxu0
        %2148 = vmatprep.mubr.f32.mxu0 0.0
        %2149 = vmatmul.mubr.f32.gmra.mrb[0].mxu0 %v2021
        %v2150 = vpop.f32.mrb[0].mxu0
        %v2151 = vadd.f32 %v1995, %v2150
        %v2152 = vpop.f32.mrb[0].mxu0
        %2153 = vmatprep.mubr.f32.mxu0 0.0
        %2154 = vmatmul.mubr.f32.gmra.mrb[0].mxu0 %v2024
        %v2155 = vpop.f32.mrb[0].mxu0
        %v2156 = vadd.f32 %v1995, %v2155
        %v2157 = vpop.f32.mrb[0].mxu0
        %2158 = vmatprep.mubr.f32.mxu0 0.0
        %2159 = vmatmul.mubr.f32.gmra.mrb[0].mxu0 %v2027
        %v2160 = vpop.f32.mrb[0].mxu0
        %v2161 = vadd.f32 %v1995, %v2160
        %v2162 = vpop.f32.mrb[0].mxu0
        %2163 = vmatprep.mubr.f32.mxu0 0.0
        %2164 = vmatmul.mubr.f32.gmra.mrb[0].mxu0 %v2030
        %v2165 = vpop.f32.mrb[0].mxu0
        %v2166 = vadd.f32 %v1995, %v2165
        %v2167 = vpop.f32.mrb[0].mxu0
        %2168 = vmatprep.mubr.f32.mxu0 0.0
        %2169 = vmatmul.mubr.f32.gmra.mrb[0].mxu0 %v2033
        %v2170 = vpop.f32.mrb[0].mxu0
        %v2171 = vadd.f32 %v1995, %v2170
        %v2172 = vpop.f32.mrb[0].mxu0
        %2173 = vmatprep.mubr.f32.mxu0 0.0
        %2174 = vmatmul.mubr.f32.gmra.mrb[0].mxu0 %v2036
        %v2175 = vpop.f32.mrb[0].mxu0
        %v2176 = vadd.f32 %v1995, %v2175
        %v2177 = vpop.f32.mrb[0].mxu0
        %2178 = vmatprep.mubr.f32.mxu0 0.0
        %2179 = vmatmul.mubr.f32.gmra.mrb[0].mxu0 %v2039
        %v2180 = vpop.f32.mrb[0].mxu0
        %v2181 = vadd.f32 %v1995, %v2180
        %v2182 = vpop.f32.mrb[0].mxu0
        %2183 = vmatprep.mubr.f32.mxu0 0.0
        %2184 = vmatmul.mubr.f32.gmra.mrb[0].mxu0 %v2042
        %v2185 = vpop.f32.mrb[0].mxu0
        %v2186 = vadd.f32 %v1995, %v2185
        %v2187 = vpop.f32.mrb[0].mxu0
        %2188 = vdwg.mxu0
        %v2189 = vmax.f32 %v2111, 0.0
        %v2190 = vmax.f32 %v2116, 0.0
        %v2191 = vmax.f32 %v2121, 0.0
        %v2192 = vmax.f32 %v2126, 0.0
        %v2193 = vmax.f32 %v2131, 0.0
        %v2194 = vmax.f32 %v2136, 0.0
        %v2195 = vmax.f32 %v2141, 0.0
        %v2196 = vmax.f32 %v2146, 0.0
        %v2197 = vmax.f32 %v2151, 0.0
        %v2198 = vmax.f32 %v2156, 0.0
        %v2199 = vmax.f32 %v2161, 0.0
        %v2200 = vmax.f32 %v2166, 0.0
        %v2201 = vmax.f32 %v2171, 0.0
        %v2202 = vmax.f32 %v2176, 0.0
        %v2203 = vmax.f32 %v2181, 0.0
        %v2204 = vmax.f32 %v2186, 0.0
        %v2205 = vsel %vm801, %v2189, -inf
        %v2206 = vsel %vm801, %v2190, -inf
        %v2207 = vmax.f32 %v2205, %v2206
        %v2208 = vrot.slane %v2207, 4
        %v2209 = vmax.f32 %v2207, %v2208
        %v2210 = vrot.slane %v2209, 2
        %v2211 = vmax.f32 %v2209, %v2210
        %v2212 = vrot.slane %v2211, 1
        %v2213 = vmax.f32 %v2211, %v2212
        %v2214 = vsel %vm801, %v2191, -inf
        %v2215 = vsel %vm801, %v2192, -inf
        %v2216 = vmax.f32 %v2214, %v2215
        %v2217 = vrot.slane %v2216, 4
        %v2218 = vmax.f32 %v2216, %v2217
        %v2219 = vrot.slane %v2218, 2
        %v2220 = vmax.f32 %v2218, %v2219
        %v2221 = vrot.slane %v2220, 1
        %v2222 = vmax.f32 %v2220, %v2221
        %v2223 = vsel %vm801, %v2193, -inf
        %v2224 = vsel %vm801, %v2194, -inf
        %v2225 = vmax.f32 %v2223, %v2224
        %v2226 = vrot.slane %v2225, 4
        %v2227 = vmax.f32 %v2225, %v2226
        %v2228 = vrot.slane %v2227, 2
        %v2229 = vmax.f32 %v2227, %v2228
        %v2230 = vrot.slane %v2229, 1
        %v2231 = vmax.f32 %v2229, %v2230
        %v2232 = vsel %vm801, %v2195, -inf
        %v2233 = vsel %vm801, %v2196, -inf
        %v2234 = vmax.f32 %v2232, %v2233
        %v2235 = vrot.slane %v2234, 4
        %v2236 = vmax.f32 %v2234, %v2235
        %v2237 = vrot.slane %v2236, 2
        %v2238 = vmax.f32 %v2236, %v2237
        %v2239 = vrot.slane %v2238, 1
        %v2240 = vmax.f32 %v2238, %v2239
        %v2241 = vsel %vm801, %v2197, -inf
        %v2242 = vsel %vm801, %v2198, -inf
        %v2243 = vmax.f32 %v2241, %v2242
        %v2244 = vrot.slane %v2243, 4
        %v2245 = vmax.f32 %v2243, %v2244
        %v2246 = vrot.slane %v2245, 2
        %v2247 = vmax.f32 %v2245, %v2246
        %v2248 = vrot.slane %v2247, 1
        %v2249 = vmax.f32 %v2247, %v2248
        %v2250 = vsel %vm801, %v2199, -inf
        %v2251 = vsel %vm801, %v2200, -inf
        %v2252 = vmax.f32 %v2250, %v2251
        %v2253 = vrot.slane %v2252, 4
        %v2254 = vmax.f32 %v2252, %v2253
        %v2255 = vrot.slane %v2254, 2
        %v2256 = vmax.f32 %v2254, %v2255
        %v2257 = vrot.slane %v2256, 1
        %v2258 = vmax.f32 %v2256, %v2257
        %v2259 = vsel %vm801, %v2201, -inf
        %v2260 = vsel %vm801, %v2202, -inf
        %v2261 = vmax.f32 %v2259, %v2260
        %v2262 = vrot.slane %v2261, 4
        %v2263 = vmax.f32 %v2261, %v2262
        %v2264 = vrot.slane %v2263, 2
        %v2265 = vmax.f32 %v2263, %v2264
        %v2266 = vrot.slane %v2265, 1
        %v2267 = vmax.f32 %v2265, %v2266
        %v2268 = vsel %vm801, %v2203, -inf
        %v2269 = vsel %vm801, %v2204, -inf
        %v2270 = vmax.f32 %v2268, %v2269
        %v2271 = vrot.slane %v2270, 4
        %v2272 = vmax.f32 %v2270, %v2271
        %v2273 = vrot.slane %v2272, 2
        %v2274 = vmax.f32 %v2272, %v2273
        %v2275 = vrot.slane %v2274, 1
        %v2276 = vmax.f32 %v2274, %v2275
        %s2277 = scalar_lea.vmem %s2, 192
        %v2278 = vld [vmem:[%s2277] sm:$0xff]
        %v2279 = vld [vmem:[%s2277 + $0x8] sm:$0xff]
        %v2280 = vld [vmem:[%s2277 + $0x10] sm:$0xff]
        %v2281 = vld [vmem:[%s2277 + $0x18] sm:$0xff]
        %v2282 = vld [vmem:[%s2277 + $0x20] sm:$0xff]
        %v2283 = vld [vmem:[%s2277 + $0x28] sm:$0xff]
        %v2284 = vld [vmem:[%s2277 + $0x30] sm:$0xff]
        %v2285 = vld [vmem:[%s2277 + $0x38] sm:$0xff]
        %v2286 = vld [vmem:[%s2277 + $0x40] sm:$0xff]
        %v2287 = vld [vmem:[%s2277 + $0x48] sm:$0xff]
        %v2288 = vld [vmem:[%s2277 + $0x50] sm:$0xff]
        %v2289 = vld [vmem:[%s2277 + $0x58] sm:$0xff]
        %v2306 = vrot.slane %v2189, 7
        %v2307 = vrot.slane %v2190, 7
        %v2308 = vsel %vm542, %v2306, %v2307
        %v2309 = vrot.slane %v2191, 7
        %v2310 = vsel %vm542, %v2307, %v2309
        %v2311 = vrot.slane %v2192, 7
        %v2312 = vsel %vm542, %v2309, %v2311
        %v2313 = vrot.slane %v2193, 7
        %v2314 = vsel %vm542, %v2311, %v2313
        %v2315 = vrot.slane %v2194, 7
        %v2316 = vsel %vm542, %v2313, %v2315
        %v2317 = vrot.slane %v2195, 7
        %v2318 = vsel %vm542, %v2315, %v2317
        %v2319 = vrot.slane %v2196, 7
        %v2320 = vsel %vm542, %v2317, %v2319
        %v2321 = vrot.slane %v2197, 7
        %v2322 = vsel %vm542, %v2319, %v2321
        %v2323 = vrot.slane %v2198, 7
        %v2324 = vsel %vm542, %v2321, %v2323
        %v2325 = vrot.slane %v2199, 7
        %v2326 = vsel %vm542, %v2323, %v2325
        %v2327 = vrot.slane %v2200, 7
        %v2328 = vsel %vm542, %v2325, %v2327
        %v2329 = vrot.slane %v2201, 7
        %v2330 = vsel %vm542, %v2327, %v2329
        %v2331 = vrot.slane %v2202, 7
        %v2332 = vsel %vm542, %v2329, %v2331
        %v2333 = vrot.slane %v2203, 7
        %v2334 = vsel %vm542, %v2331, %v2333
        %v2335 = vrot.slane %v2204, 7
        %v2336 = vsel %vm542, %v2333, %v2335
        %v2353 = vsel %vm542, 0.0, %v2306
        %v2354 = vmul.f32 %v2353, %v439
        %v2355 = vmul.f32 %v2308, %v440
        %v2356 = vmul.f32 %v2310, %v441
        %v2357 = vmul.f32 %v2312, %v442
        %v2358 = vmul.f32 %v2314, %v443
        %v2359 = vmul.f32 %v2316, %v444
        %v2360 = vmul.f32 %v2318, %v445
        %v2361 = vmul.f32 %v2320, %v446
        %v2362 = vmul.f32 %v2322, %v447
        %v2363 = vmul.f32 %v2324, %v448
        %v2364 = vmul.f32 %v2326, %v449
        %v2365 = vmul.f32 %v2328, %v450
        %v2366 = vmul.f32 %v2330, %v451
        %v2367 = vmul.f32 %v2332, %v452
        %v2368 = vmul.f32 %v2334, %v453
        %v2369 = vmul.f32 %v2336, %v454
        %v2370 = vrot.slane %v2189, 1
        %v2371 = vrot.slane %v2190, 1
        %v2372 = vsel %vm607, %v2370, %v2371
        %v2373 = vrot.slane %v2191, 1
        %v2374 = vsel %vm607, %v2371, %v2373
        %v2375 = vrot.slane %v2192, 1
        %v2376 = vsel %vm607, %v2373, %v2375
        %v2377 = vrot.slane %v2193, 1
        %v2378 = vsel %vm607, %v2375, %v2377
        %v2379 = vrot.slane %v2194, 1
        %v2380 = vsel %vm607, %v2377, %v2379
        %v2381 = vrot.slane %v2195, 1
        %v2382 = vsel %vm607, %v2379, %v2381
        %v2383 = vrot.slane %v2196, 1
        %v2384 = vsel %vm607, %v2381, %v2383
        %v2385 = vrot.slane %v2197, 1
        %v2386 = vsel %vm607, %v2383, %v2385
        %v2387 = vrot.slane %v2198, 1
        %v2388 = vsel %vm607, %v2385, %v2387
        %v2389 = vrot.slane %v2199, 1
        %v2390 = vsel %vm607, %v2387, %v2389
        %v2391 = vrot.slane %v2200, 1
        %v2392 = vsel %vm607, %v2389, %v2391
        %v2393 = vrot.slane %v2201, 1
        %v2394 = vsel %vm607, %v2391, %v2393
        %v2395 = vrot.slane %v2202, 1
        %v2396 = vsel %vm607, %v2393, %v2395
        %v2397 = vrot.slane %v2203, 1
        %v2398 = vsel %vm607, %v2395, %v2397
        %v2399 = vrot.slane %v2204, 1
        %v2400 = vsel %vm607, %v2397, %v2399
        %v2417 = vsel %vm607, %v2399, 0.0
        %v2418 = vmul.f32 %v2372, %v487
        %v2419 = vmul.f32 %v2374, %v488
        %v2420 = vmul.f32 %v2376, %v489
        %v2421 = vmul.f32 %v2378, %v490
        %v2422 = vmul.f32 %v2380, %v491
        %v2423 = vmul.f32 %v2382, %v492
        %v2424 = vmul.f32 %v2384, %v493
        %v2425 = vmul.f32 %v2386, %v494
        %v2426 = vmul.f32 %v2388, %v495
        %v2427 = vmul.f32 %v2390, %v496
        %v2428 = vmul.f32 %v2392, %v497
        %v2429 = vmul.f32 %v2394, %v498
        %v2430 = vmul.f32 %v2396, %v499
        %v2431 = vmul.f32 %v2398, %v500
        %v2432 = vmul.f32 %v2400, %v501
        %v2433 = vmul.f32 %v2417, %v502
        %2434 = vrot.lane.b32.xlu0 %v2189, 32
        %v2435 = vpop.permute.xlu0 %2434
        %2436 = vrot.lane.b32.xlu0 %v2190, 32
        %v2437 = vpop.permute.xlu0 %2436
        %2438 = vrot.lane.b32.xlu0 %v2191, 32
        %v2439 = vpop.permute.xlu0 %2438
        %2440 = vrot.lane.b32.xlu0 %v2192, 32
        %v2441 = vpop.permute.xlu0 %2440
        %2442 = vrot.lane.b32.xlu0 %v2193, 32
        %v2443 = vpop.permute.xlu0 %2442
        %2444 = vrot.lane.b32.xlu0 %v2194, 32
        %v2445 = vpop.permute.xlu0 %2444
        %2446 = vrot.lane.b32.xlu0 %v2195, 32
        %v2447 = vpop.permute.xlu0 %2446
        %2448 = vrot.lane.b32.xlu0 %v2196, 32
        %v2449 = vpop.permute.xlu0 %2448
        %2450 = vrot.lane.b32.xlu0 %v2197, 32
        %v2451 = vpop.permute.xlu0 %2450
        %2452 = vrot.lane.b32.xlu0 %v2198, 32
        %v2453 = vpop.permute.xlu0 %2452
        %2454 = vrot.lane.b32.xlu0 %v2199, 32
        %v2455 = vpop.permute.xlu0 %2454
        %2456 = vrot.lane.b32.xlu0 %v2200, 32
        %v2457 = vpop.permute.xlu0 %2456
        %2458 = vrot.lane.b32.xlu0 %v2201, 32
        %v2459 = vpop.permute.xlu0 %2458
        %2460 = vrot.lane.b32.xlu0 %v2202, 32
        %v2461 = vpop.permute.xlu0 %2460
        %2462 = vrot.lane.b32.xlu0 %v2203, 32
        %v2463 = vpop.permute.xlu0 %2462
        %2464 = vrot.lane.b32.xlu0 %v2204, 32
        %v2465 = vpop.permute.xlu0 %2464
        %2498 = vrot.lane.b32.xlu0 %v2418, 64
        %v2499 = vpop.permute.xlu0 %2498
        %2500 = vrot.lane.b32.xlu0 %v2419, 64
        %v2501 = vpop.permute.xlu0 %2500
        %2502 = vrot.lane.b32.xlu0 %v2420, 64
        %v2503 = vpop.permute.xlu0 %2502
        %2504 = vrot.lane.b32.xlu0 %v2421, 64
        %v2505 = vpop.permute.xlu0 %2504
        %2506 = vrot.lane.b32.xlu0 %v2422, 64
        %v2507 = vpop.permute.xlu0 %2506
        %2508 = vrot.lane.b32.xlu0 %v2423, 64
        %v2509 = vpop.permute.xlu0 %2508
        %2510 = vrot.lane.b32.xlu0 %v2424, 64
        %v2511 = vpop.permute.xlu0 %2510
        %2512 = vrot.lane.b32.xlu0 %v2425, 64
        %v2513 = vpop.permute.xlu0 %2512
        %2514 = vrot.lane.b32.xlu0 %v2426, 64
        %v2515 = vpop.permute.xlu0 %2514
        %2516 = vrot.lane.b32.xlu0 %v2427, 64
        %v2517 = vpop.permute.xlu0 %2516
        %2518 = vrot.lane.b32.xlu0 %v2428, 64
        %v2519 = vpop.permute.xlu0 %2518
        %2520 = vrot.lane.b32.xlu0 %v2429, 64
        %v2521 = vpop.permute.xlu0 %2520
        %2522 = vrot.lane.b32.xlu0 %v2430, 64
        %v2523 = vpop.permute.xlu0 %2522
        %2524 = vrot.lane.b32.xlu0 %v2431, 64
        %v2525 = vpop.permute.xlu0 %2524
        %2526 = vrot.lane.b32.xlu0 %v2432, 64
        %v2527 = vpop.permute.xlu0 %2526
        %2528 = vrot.lane.b32.xlu0 %v2433, 64
        %v2529 = vpop.permute.xlu0 %2528
        %v2546 = vsel %vm801, %v2354, %v2435
        %v2547 = vsel %vm801, %v2355, %v2437
        %v2548 = vsel %vm801, %v2356, %v2439
        %v2549 = vsel %vm801, %v2357, %v2441
        %v2550 = vsel %vm801, %v2358, %v2443
        %v2551 = vsel %vm801, %v2359, %v2445
        %v2552 = vsel %vm801, %v2360, %v2447
        %v2553 = vsel %vm801, %v2361, %v2449
        %v2554 = vsel %vm801, %v2362, %v2451
        %v2555 = vsel %vm801, %v2363, %v2453
        %v2556 = vsel %vm801, %v2364, %v2455
        %v2557 = vsel %vm801, %v2365, %v2457
        %v2558 = vsel %vm801, %v2366, %v2459
        %v2559 = vsel %vm801, %v2367, %v2461
        %v2560 = vsel %vm801, %v2368, %v2463
        %v2561 = vsel %vm801, %v2369, %v2465
        %v2562 = vsel %vm1388, %v2546, %v2499
        %v2563 = vsel %vm1388, %v2547, %v2501
        %v2564 = vsel %vm1388, %v2548, %v2503
        %v2565 = vsel %vm1388, %v2549, %v2505
        %v2566 = vsel %vm1388, %v2550, %v2507
        %v2567 = vsel %vm1388, %v2551, %v2509
        %v2568 = vsel %vm1388, %v2552, %v2511
        %v2569 = vsel %vm1388, %v2553, %v2513
        %v2570 = vsel %vm1388, %v2554, %v2515
        %v2571 = vsel %vm1388, %v2555, %v2517
        %v2572 = vsel %vm1388, %v2556, %v2519
        %v2573 = vsel %vm1388, %v2557, %v2521
        %v2574 = vsel %vm1388, %v2558, %v2523
        %v2575 = vsel %vm1388, %v2559, %v2525
        %v2576 = vsel %vm1388, %v2560, %v2527
        %v2577 = vsel %vm1388, %v2561, %v2529
        %v2578 = vlaneseq
        %v2579 = vshrl.u32 %v2578, 7
        %v2580 = vsub.s32 3, %v2579
        %v2581 = vrot.slane %v503, %v2580
        %v2583 = vsel %vm1409, %v2562, 0
        %v2586 = vsel %vm1409, %v2563, 0
        %v2589 = vsel %vm1409, %v2564, 0
        %v2592 = vsel %vm1409, %v2565, 0
        %v2595 = vsel %vm1409, %v2566, 0
        %v2598 = vsel %vm1409, %v2567, 0
        %v2601 = vsel %vm1409, %v2568, 0
        %v2604 = vsel %vm1409, %v2569, 0
        %v2607 = vsel %vm1409, %v2570, 0
        %v2610 = vsel %vm1409, %v2571, 0
        %v2613 = vsel %vm1409, %v2572, 0
        %v2616 = vsel %vm1409, %v2573, 0
        %v2619 = vsel %vm1409, %v2574, 0
        %v2622 = vsel %vm1409, %v2575, 0
        %v2625 = vsel %vm1409, %v2576, 0
        %v2628 = vsel %vm1409, %v2577, 0
        %2630 = vmatprep.subr.mxu0 0.0
        %2631 = vmatpush1.msra.mxu0 %v2278
        %2632 = vmatprep.subr.mxu0 0.0
        %2633 = vmatpush1.msra.mxu0 %v2279
        %2634 = vmatprep.subr.mxu0 0.0
        %2635 = vmatpush1.msra.mxu0 %v2280
        %2636 = vmatprep.subr.mxu0 0.0
        %2637 = vmatpush1.msra.mxu0 %v2281
        %2638 = vmatprep.subr.mxu0 0.0
        %2639 = vmatpush1.msra.mxu0 %v2282
        %2640 = vmatprep.subr.mxu0 0.0
        %2641 = vmatpush1.msra.mxu0 %v2283
        %2642 = vmatprep.subr.mxu0 0.0
        %2643 = vmatpush1.msra.mxu0 %v2284
        %2644 = vmatprep.subr.mxu0 0.0
        %2645 = vmatpush1.msra.mxu0 %v2285
        %2646 = vmatprep.subr.mxu0 0.0
        %2647 = vmatpush1.msra.mxu0 %v2286
        %2648 = vmatprep.subr.mxu0 0.0
        %2649 = vmatpush1.msra.mxu0 %v2287
        %2650 = vmatprep.subr.mxu0 0.0
        %2651 = vmatpush1.msra.mxu0 %v2288
        %2652 = vmatprep.subr.mxu0 0.0
        %2653 = vmatpush1.msra.mxu0 %v2289
        %2654 = vmatprep.subr.mxu0 0.0
        %2655 = vmatpush1.msra.mxu0 0.0
        %2656 = vmatprep.subr.mxu0 0.0
        %2657 = vmatpush1.msra.mxu0 0.0
        %2658 = vmatprep.subr.mxu0 0.0
        %2659 = vmatpush1.msra.mxu0 0.0
        %2660 = vmatprep.subr.mxu0 0.0
        %2661 = vmatpush1.msra.mxu0 0.0
        %2662 = vmatprep.subr.mxu0 0.0
        %2663 = vmatpush1.msra.mxu0 0.0
        %2664 = vmatprep.subr.mxu0 0.0
        %2665 = vmatpush1.msra.mxu0 0.0
        %2666 = vmatprep.subr.mxu0 0.0
        %2667 = vmatpush1.msra.mxu0 0.0
        %2668 = vmatprep.subr.mxu0 0.0
        %2669 = vmatpush1.msra.mxu0 0.0
        %2670 = vmatprep.subr.mxu0 0.0
        %2671 = vmatpush1.msra.mxu0 0.0
        %2672 = vmatprep.subr.mxu0 0.0
        %2673 = vmatpush1.msra.mxu0 0.0
        %2674 = vmatprep.subr.mxu0 0.0
        %2675 = vmatpush1.msra.mxu0 0.0
        %2676 = vmatprep.subr.mxu0 0.0
        %2677 = vmatpush1.msra.mxu0 0.0
        %2678 = vmatprep.subr.mxu0 0.0
        %2679 = vmatpush1.msra.mxu0 0.0
        %2680 = vmatprep.subr.mxu0 0.0
        %2681 = vmatpush1.msra.mxu0 0.0
        %2682 = vmatprep.subr.mxu0 0.0
        %2683 = vmatpush1.msra.mxu0 0.0
        %2684 = vmatprep.subr.mxu0 0.0
        %2685 = vmatpush1.msra.mxu0 0.0
        %2686 = vmatprep.subr.mxu0 0.0
        %2687 = vmatpush1.msra.mxu0 0.0
        %2688 = vmatprep.subr.mxu0 0.0
        %2689 = vmatpush1.msra.mxu0 0.0
        %2690 = vmatprep.subr.mxu0 0.0
        %2691 = vmatpush1.msra.mxu0 0.0
        %2692 = vmatprep.subr.mxu0 0.0
        %2693 = vmatpush1.msra.mxu0 0.0
        %2694 = vmatprep.mubr.f32.mxu0 0.0
        %2695 = vmatmul.mubr.f32.gmra.mrb[0].mxu0 %v2583
        %v2696 = vpop.f32.mrb[0].mxu0
        %v2697 = vadd.f32 %v2581, %v2696
        %v2698 = vpop.f32.mrb[0].mxu0
        %2699 = vmatprep.mubr.f32.mxu0 0.0
        %2700 = vmatmul.mubr.f32.gmra.mrb[0].mxu0 %v2586
        %v2701 = vpop.f32.mrb[0].mxu0
        %v2702 = vadd.f32 %v2581, %v2701
        %v2703 = vpop.f32.mrb[0].mxu0
        %2704 = vmatprep.mubr.f32.mxu0 0.0
        %2705 = vmatmul.mubr.f32.gmra.mrb[0].mxu0 %v2589
        %v2706 = vpop.f32.mrb[0].mxu0
        %v2707 = vadd.f32 %v2581, %v2706
        %v2708 = vpop.f32.mrb[0].mxu0
        %2709 = vmatprep.mubr.f32.mxu0 0.0
        %2710 = vmatmul.mubr.f32.gmra.mrb[0].mxu0 %v2592
        %v2711 = vpop.f32.mrb[0].mxu0
        %v2712 = vadd.f32 %v2581, %v2711
        %v2713 = vpop.f32.mrb[0].mxu0
        %2714 = vmatprep.mubr.f32.mxu0 0.0
        %2715 = vmatmul.mubr.f32.gmra.mrb[0].mxu0 %v2595
        %v2716 = vpop.f32.mrb[0].mxu0
        %v2717 = vadd.f32 %v2581, %v2716
        %v2718 = vpop.f32.mrb[0].mxu0
        %2719 = vmatprep.mubr.f32.mxu0 0.0
        %2720 = vmatmul.mubr.f32.gmra.mrb[0].mxu0 %v2598
        %v2721 = vpop.f32.mrb[0].mxu0
        %v2722 = vadd.f32 %v2581, %v2721
        %v2723 = vpop.f32.mrb[0].mxu0
        %2724 = vmatprep.mubr.f32.mxu0 0.0
        %2725 = vmatmul.mubr.f32.gmra.mrb[0].mxu0 %v2601
        %v2726 = vpop.f32.mrb[0].mxu0
        %v2727 = vadd.f32 %v2581, %v2726
        %v2728 = vpop.f32.mrb[0].mxu0
        %2729 = vmatprep.mubr.f32.mxu0 0.0
        %2730 = vmatmul.mubr.f32.gmra.mrb[0].mxu0 %v2604
        %v2731 = vpop.f32.mrb[0].mxu0
        %v2732 = vadd.f32 %v2581, %v2731
        %v2733 = vpop.f32.mrb[0].mxu0
        %2734 = vmatprep.mubr.f32.mxu0 0.0
        %2735 = vmatmul.mubr.f32.gmra.mrb[0].mxu0 %v2607
        %v2736 = vpop.f32.mrb[0].mxu0
        %v2737 = vadd.f32 %v2581, %v2736
        %v2738 = vpop.f32.mrb[0].mxu0
        %2739 = vmatprep.mubr.f32.mxu0 0.0
        %2740 = vmatmul.mubr.f32.gmra.mrb[0].mxu0 %v2610
        %v2741 = vpop.f32.mrb[0].mxu0
        %v2742 = vadd.f32 %v2581, %v2741
        %v2743 = vpop.f32.mrb[0].mxu0
        %2744 = vmatprep.mubr.f32.mxu0 0.0
        %2745 = vmatmul.mubr.f32.gmra.mrb[0].mxu0 %v2613
        %v2746 = vpop.f32.mrb[0].mxu0
        %v2747 = vadd.f32 %v2581, %v2746
        %v2748 = vpop.f32.mrb[0].mxu0
        %2749 = vmatprep.mubr.f32.mxu0 0.0
        %2750 = vmatmul.mubr.f32.gmra.mrb[0].mxu0 %v2616
        %v2751 = vpop.f32.mrb[0].mxu0
        %v2752 = vadd.f32 %v2581, %v2751
        %v2753 = vpop.f32.mrb[0].mxu0
        %2754 = vmatprep.mubr.f32.mxu0 0.0
        %2755 = vmatmul.mubr.f32.gmra.mrb[0].mxu0 %v2619
        %v2756 = vpop.f32.mrb[0].mxu0
        %v2757 = vadd.f32 %v2581, %v2756
        %v2758 = vpop.f32.mrb[0].mxu0
        %2759 = vmatprep.mubr.f32.mxu0 0.0
        %2760 = vmatmul.mubr.f32.gmra.mrb[0].mxu0 %v2622
        %v2761 = vpop.f32.mrb[0].mxu0
        %v2762 = vadd.f32 %v2581, %v2761
        %v2763 = vpop.f32.mrb[0].mxu0
        %2764 = vmatprep.mubr.f32.mxu0 0.0
        %2765 = vmatmul.mubr.f32.gmra.mrb[0].mxu0 %v2625
        %v2766 = vpop.f32.mrb[0].mxu0
        %v2767 = vadd.f32 %v2581, %v2766
        %v2768 = vpop.f32.mrb[0].mxu0
        %2769 = vmatprep.mubr.f32.mxu0 0.0
        %2770 = vmatmul.mubr.f32.gmra.mrb[0].mxu0 %v2628
        %v2771 = vpop.f32.mrb[0].mxu0
        %v2772 = vadd.f32 %v2581, %v2771
        %v2773 = vpop.f32.mrb[0].mxu0
        %2774 = vdwg.mxu0
        %v2775 = vmax.f32 %v2697, 0.0
        %v2776 = vmax.f32 %v2702, 0.0
        %v2777 = vmax.f32 %v2707, 0.0
        %v2778 = vmax.f32 %v2712, 0.0
        %v2779 = vmax.f32 %v2717, 0.0
        %v2780 = vmax.f32 %v2722, 0.0
        %v2781 = vmax.f32 %v2727, 0.0
        %v2782 = vmax.f32 %v2732, 0.0
        %v2783 = vmax.f32 %v2737, 0.0
        %v2784 = vmax.f32 %v2742, 0.0
        %v2785 = vmax.f32 %v2747, 0.0
        %v2786 = vmax.f32 %v2752, 0.0
        %v2787 = vmax.f32 %v2757, 0.0
        %v2788 = vmax.f32 %v2762, 0.0
        %v2789 = vmax.f32 %v2767, 0.0
        %v2790 = vmax.f32 %v2772, 0.0
        %v2791 = vsel %vm801, %v2775, -inf
        %v2792 = vsel %vm801, %v2776, -inf
        %v2793 = vmax.f32 %v2791, %v2792
        %v2794 = vrot.slane %v2793, 4
        %v2795 = vmax.f32 %v2793, %v2794
        %v2796 = vrot.slane %v2795, 2
        %v2797 = vmax.f32 %v2795, %v2796
        %v2798 = vrot.slane %v2797, 1
        %v2799 = vmax.f32 %v2797, %v2798
        %v2800 = vsel %vm801, %v2777, -inf
        %v2801 = vsel %vm801, %v2778, -inf
        %v2802 = vmax.f32 %v2800, %v2801
        %v2803 = vrot.slane %v2802, 4
        %v2804 = vmax.f32 %v2802, %v2803
        %v2805 = vrot.slane %v2804, 2
        %v2806 = vmax.f32 %v2804, %v2805
        %v2807 = vrot.slane %v2806, 1
        %v2808 = vmax.f32 %v2806, %v2807
        %v2809 = vsel %vm801, %v2779, -inf
        %v2810 = vsel %vm801, %v2780, -inf
        %v2811 = vmax.f32 %v2809, %v2810
        %v2812 = vrot.slane %v2811, 4
        %v2813 = vmax.f32 %v2811, %v2812
        %v2814 = vrot.slane %v2813, 2
        %v2815 = vmax.f32 %v2813, %v2814
        %v2816 = vrot.slane %v2815, 1
        %v2817 = vmax.f32 %v2815, %v2816
        %v2818 = vsel %vm801, %v2781, -inf
        %v2819 = vsel %vm801, %v2782, -inf
        %v2820 = vmax.f32 %v2818, %v2819
        %v2821 = vrot.slane %v2820, 4
        %v2822 = vmax.f32 %v2820, %v2821
        %v2823 = vrot.slane %v2822, 2
        %v2824 = vmax.f32 %v2822, %v2823
        %v2825 = vrot.slane %v2824, 1
        %v2826 = vmax.f32 %v2824, %v2825
        %v2827 = vsel %vm801, %v2783, -inf
        %v2828 = vsel %vm801, %v2784, -inf
        %v2829 = vmax.f32 %v2827, %v2828
        %v2830 = vrot.slane %v2829, 4
        %v2831 = vmax.f32 %v2829, %v2830
        %v2832 = vrot.slane %v2831, 2
        %v2833 = vmax.f32 %v2831, %v2832
        %v2834 = vrot.slane %v2833, 1
        %v2835 = vmax.f32 %v2833, %v2834
        %v2836 = vsel %vm801, %v2785, -inf
        %v2837 = vsel %vm801, %v2786, -inf
        %v2838 = vmax.f32 %v2836, %v2837
        %v2839 = vrot.slane %v2838, 4
        %v2840 = vmax.f32 %v2838, %v2839
        %v2841 = vrot.slane %v2840, 2
        %v2842 = vmax.f32 %v2840, %v2841
        %v2843 = vrot.slane %v2842, 1
        %v2844 = vmax.f32 %v2842, %v2843
        %v2845 = vsel %vm801, %v2787, -inf
        %v2846 = vsel %vm801, %v2788, -inf
        %v2847 = vmax.f32 %v2845, %v2846
        %v2848 = vrot.slane %v2847, 4
        %v2849 = vmax.f32 %v2847, %v2848
        %v2850 = vrot.slane %v2849, 2
        %v2851 = vmax.f32 %v2849, %v2850
        %v2852 = vrot.slane %v2851, 1
        %v2853 = vmax.f32 %v2851, %v2852
        %v2854 = vsel %vm801, %v2789, -inf
        %v2855 = vsel %vm801, %v2790, -inf
        %v2856 = vmax.f32 %v2854, %v2855
        %v2857 = vrot.slane %v2856, 4
        %v2858 = vmax.f32 %v2856, %v2857
        %v2859 = vrot.slane %v2858, 2
        %v2860 = vmax.f32 %v2858, %v2859
        %v2861 = vrot.slane %v2860, 1
        %v2862 = vmax.f32 %v2860, %v2861
        %vm2871 = vcmask 1041409
        %v2872 = vsel %vm2871, %v1049, %v1040
        %vm2873 = vcmask 1042434
        %v2874 = vsel %vm2873, %v1058, %v2872
        %vm2875 = vcmask 1043459
        %v2876 = vsel %vm2875, %v1067, %v2874
        %vm2877 = vcmask 1044484
        %v2878 = vsel %vm2877, %v1076, %v2876
        %vm2879 = vcmask 1045509
        %v2880 = vsel %vm2879, %v1085, %v2878
        %vm2881 = vcmask 1046534
        %v2882 = vsel %vm2881, %v1094, %v2880
        %vm2883 = vcmask 1047559
        %v2884 = vsel %vm2883, %v1103, %v2882
        %v2894 = vsel %vm2871, %v1636, %v1627
        %v2895 = vsel %vm2873, %v1645, %v2894
        %v2896 = vsel %vm2875, %v1654, %v2895
        %v2897 = vsel %vm2877, %v1663, %v2896
        %v2898 = vsel %vm2879, %v1672, %v2897
        %v2899 = vsel %vm2881, %v1681, %v2898
        %v2900 = vsel %vm2883, %v1690, %v2899
        %2901 = vrot.lane.b32.xlu0 %v2900, 32
        %v2902 = vpop.permute.xlu0 %2901
        %v2912 = vsel %vm2871, %v2222, %v2213
        %v2913 = vsel %vm2873, %v2231, %v2912
        %v2914 = vsel %vm2875, %v2240, %v2913
        %v2915 = vsel %vm2877, %v2249, %v2914
        %v2916 = vsel %vm2879, %v2258, %v2915
        %v2917 = vsel %vm2881, %v2267, %v2916
        %v2918 = vsel %vm2883, %v2276, %v2917
        %2919 = vrot.lane.b32.xlu0 %v2918, 64
        %v2920 = vpop.permute.xlu0 %2919
        %v2930 = vsel %vm2871, %v2808, %v2799
        %v2931 = vsel %vm2873, %v2817, %v2930
        %v2932 = vsel %vm2875, %v2826, %v2931
        %v2933 = vsel %vm2877, %v2835, %v2932
        %v2934 = vsel %vm2879, %v2844, %v2933
        %v2935 = vsel %vm2881, %v2853, %v2934
        %v2936 = vsel %vm2883, %v2862, %v2935
        %2937 = vrot.lane.b32.xlu0 %v2936, 96
        %v2938 = vpop.permute.xlu0 %2937
        %v2940 = vsel %vm801, %v2884, %v2902
        %v2941 = vsel %vm1388, %v2940, %v2920
        %v2942 = vsel %vm1409, %v2941, %v2938
        %2943 = vst [vmem:[%s191] sm:$0xff] %v2942
        %s2944 = sand.u32 %s115, 1
        %s2945 = scalar_lea.sflag [#allocation3], %s2944
        %s2946 = sand.u32 %s115, 1
        %s2947 = smul.addr %s2946, 8
        %s2948 = scalar_lea.vmem [#allocation2], %s2947
        // Predicated region
        $region37: #{hiconvnet_encoder.1} parent=35 // pred_check
          %p2949 = pneg %p125
        $region38: #{hiconvnet_encoder.1} parent=35 // pred_check_branch
          %2951 = sbr.rel (%p2949) target = $region40
        $region39: #{hiconvnet_encoder.1} parent=35 // pred_region
          %s2953 = ssub.s32 128, 128
          %2954 = vsyncadd %s2945, %s2953
          %s2955 = smul.addr %s18, 128
          %s2956 = scalar_lea.hbm %s4, %s2955
          %s2958 = sshll.u32 %s2948, 4
          %s2959 = int_to_ptr.vmem [resolvable:$true] %s2958
          %2961 = dma.vmem_to_hbm [thread:$0]  %s2959, 128, %s2956, %s2945
        $region40: #{hiconvnet_encoder.1} parent=35 // pred_fallthru
          _
      $region36: #{hiconvnet_encoder.1} parent=5 // pred_fallthru
        _
      %p2962 = scmp.le.s32.totalorder 2, %s13
      // Predicated region
      $region41: #{hiconvnet_encoder.1} parent=5 // pred_check
        %p2963 = pneg %p2962
      $region42: #{hiconvnet_encoder.1} parent=5 // pred_check_branch
        %2965 = sbr.rel (%p2963) target = $region44
      $region43: #{hiconvnet_encoder.1} parent=5 // pred_region
        %s2966 = ssub.s32 %s13, 2
        // Predicated region
        $region45: #{hiconvnet_encoder.1} parent=43 // pred_check
          %p2967 = pneg %p131
        $region46: #{hiconvnet_encoder.1} parent=43 // pred_check_branch
          %2969 = sbr.rel (%p2967) target = $region48
        $region47: #{hiconvnet_encoder.1} parent=43 // pred_region
          %s2970 = sand.u32 %s116, 1
          %s2971 = scalar_lea.sflag [#allocation3], %s2970
          %s2972 = sand.u32 %s116, 1
          %s2973 = smul.addr %s2972, 8
          %s2974 = scalar_lea.vmem [#allocation2], %s2973
          %2975 = dma.done %s2971, 128
        $region48: #{hiconvnet_encoder.1} parent=43 // pred_fallthru
          _
      $region44: #{hiconvnet_encoder.1} parent=5 // pred_fallthru
        _
    $region6: #{hiconvnet_encoder.1} parent=1 // loop_footer
      %s17 = sadd.s32 1, %s13
    $region7: #{hiconvnet_encoder.1} parent=1 // loop_footer_branch
      %12 = sbr.rel target = $region3
    $region8: #{hiconvnet_encoder.1} parent=1 // loop_exit
      _
    %2976 = vsyncpa [#allocation3], 1
    %s2977 = scalar_lea.sflag [#allocation3], 1
    %2978 = vsyncpa %s2977, 1

</llo_original>
